<compile_context>
chip_gen: v6e
topology: v6e:2x2x1
jax: 0.10.0
libtpu: 0.0.40
codegen_flags: <defaults>
</compile_context>

<pallas_src>
import jax
import jax.numpy as jnp
from jax.experimental import pallas as pl
from jax.experimental.pallas import tpu as pltpu


def _pos_embed_kernel(col_ref, row_ref, ex_ref, ey_ref, out_ref):
    """col_ref: (tC, W); row_ref: (tC, H); ex_ref: (W, H*W); ey_ref: (H, H*W);
    out_ref: (1, tC, H*W).  Grid = (half, channel-block)."""
    half = pl.program_id(0)

    @pl.when(half == 0)
    def _():
        # x half: out[c, h*W + w] = col_emb[w, c]  (single lane-aligned MXU op)
        out_ref[0] = jnp.dot(
            col_ref[...], ex_ref[...],
            preferred_element_type=jnp.float32,
            precision=jax.lax.Precision.HIGHEST,
        ).astype(out_ref.dtype)

    @pl.when(half == 1)
    def _():
        # y half: out[c, h*W + w] = row_emb[h, c]
        out_ref[0] = jnp.dot(
            row_ref[...], ey_ref[...],
            preferred_element_type=jnp.float32,
            precision=jax.lax.Precision.HIGHEST,
        ).astype(out_ref.dtype)


def _pick_tile_c(F, HW, itemsize, target_bytes):
    """Largest channel tile tC for one half: either F itself (full dim, no
    alignment constraint) or a multiple-of-8 divisor of F whose output block
    (tC, HW) fits target_bytes.  With the 50-entry embedding tables HW <= 2500,
    so a single block per half fits comfortably at the default F=256."""
    if F * HW * itemsize <= target_bytes:
        return F
    fitting = [tc for tc in range(8, F, 8)
               if F % tc == 0 and tc * HW * itemsize <= target_bytes]
    return max(fitting) if fitting else F


def position_embedding_learned(x, row_weight, col_weight, *,
                               out_dtype=None,
                               block_bytes_target=4 * 1024 * 1024):
    """Forward pass of PositionEmbeddingLearned.

    x:          (B, C, H, W)  -- only the shape is used.
    row_weight: (50, F) learned row embedding table.
    col_weight: (50, F) learned col embedding table.
    returns     (B, 2F, H, W) in `out_dtype` (default: weight dtype).
    """
    B = x.shape[0]
    H, W = int(x.shape[-2]), int(x.shape[-1])
    F = int(row_weight.shape[1])
    if H > row_weight.shape[0] or W > col_weight.shape[0]:
        raise ValueError("H/W exceed the 50-entry learned embedding tables")
    if out_dtype is None:
        out_dtype = row_weight.dtype
    itemsize = jnp.dtype(out_dtype).itemsize
    HW = H * W

    # arange-embedding lookup == slicing the first W/H rows; pre-transpose the
    # tiny (<=50, F) tables so the channel axis is the kernel sublane axis.
    col_t = col_weight[:W].astype(jnp.float32).T                     # (F, W)
    row_t = row_weight[:H].astype(jnp.float32).T                     # (F, H)

    # 0/1 expansion matrices (built once in the wrapper, VMEM-resident):
    #   E_x[w', h*W + w] = (w == w')  -> col_t @ E_x tiles the W-pattern H times
    #   E_y[h', h*W + w] = (h == h')  -> row_t @ E_y repeats each row W times
    lane = jnp.arange(HW, dtype=jnp.int32)
    e_x = (lane[None, :] % W ==
           jnp.arange(W, dtype=jnp.int32)[:, None]).astype(jnp.float32)   # (W, HW)
    e_y = (lane[None, :] // W ==
           jnp.arange(H, dtype=jnp.int32)[:, None]).astype(jnp.float32)   # (H, HW)

    tC = _pick_tile_c(F, HW, itemsize, block_bytes_target)
    n_c = F // tC

    # Explicit VMEM budget: double-buffered output block + resident inputs.
    out_blk = tC * HW * itemsize
    in_blk = tC * (W + H) * 4 + (W + H) * HW * 4
    vmem_limit = int(min(56 * 2**20, max(2 * (out_blk + in_blk) + (2 << 20),
                                         16 << 20)))

    out3 = pl.pallas_call(
        _pos_embed_kernel,
        out_shape=jax.ShapeDtypeStruct((2, F, HW), out_dtype),
        grid=(2, n_c),
        in_specs=[
            pl.BlockSpec((tC, W), lambda half, cb: (cb, 0)),
            pl.BlockSpec((tC, H), lambda half, cb: (cb, 0)),
            pl.BlockSpec((W, HW), lambda half, cb: (0, 0)),   # VMEM-resident
            pl.BlockSpec((H, HW), lambda half, cb: (0, 0)),   # VMEM-resident
        ],
        out_specs=pl.BlockSpec((1, tC, HW), lambda half, cb: (half, cb, 0)),
        compiler_params=pltpu.CompilerParams(
            dimension_semantics=("parallel", "parallel"),
            vmem_limit_bytes=vmem_limit),
    )(col_t, row_t, e_x, e_y)

    # (2, F, H*W) -> (2F, H, W): contiguous split, pure metadata reshape.
    pos2d = out3.reshape(2 * F, H, W)
    # Batch dimension is a free broadcast (the module writes B identical copies).
    return jnp.broadcast_to(pos2d[None], (B, 2 * F, H, W))


if __name__ == "__main__":
    key = jax.random.PRNGKey(0)
    k_row, k_col, k_x = jax.random.split(key, 3)

    num_pos_feats = 32          # small stand-in for the default 256
    B, C, H, W = 2, 4, 16, 16

    # nn.init.uniform_ -> U[0, 1) deterministic init (synthetic, no checkpoint).
    row_weight = jax.random.uniform(k_row, (50, num_pos_feats), dtype=jnp.float32)
    col_weight = jax.random.uniform(k_col, (50, num_pos_feats), dtype=jnp.float32)
    x = jax.random.normal(k_x, (B, C, H, W), dtype=jnp.float32)

    pos = jax.block_until_ready(position_embedding_learned(x, row_weight, col_weight))

    # Pure-JAX reference of the exact PyTorch semantics.
    x_emb = col_weight[:W]                                   # (W, F)
    y_emb = row_weight[:H]                                   # (H, F)
    ref = jnp.concatenate(
        [jnp.broadcast_to(x_emb[None], (H, W, num_pos_feats)),
         jnp.broadcast_to(y_emb[:, None], (H, W, num_pos_feats))],
        axis=-1,
    )
    ref = jnp.broadcast_to(jnp.transpose(ref, (2, 0, 1))[None],
                           (B, 2 * num_pos_feats, H, W))

    assert pos.shape == (B, 2 * num_pos_feats, H, W)
    assert pos.dtype == jnp.float32
    assert jnp.allclose(pos, ref, rtol=0.0, atol=1e-6), "mismatch vs reference"
    print("KERNEL_OK")
</pallas_src>

<mosaic_0001>
module attributes {stable_mosaic.version = 11 : i64} {
  func.func @_pos_embed_kernel(%arg0: i32, %arg1: i32, %arg2: memref<32x16xf32, #tpu.memory_space<vmem>>, %arg3: memref<32x16xf32, #tpu.memory_space<vmem>>, %arg4: memref<16x256xf32, #tpu.memory_space<vmem>>, %arg5: memref<16x256xf32, #tpu.memory_space<vmem>>, %arg6: memref<1x32x256xf32, #tpu.memory_space<vmem>>) attributes {dimension_semantics = [#tpu.dimension_semantics<parallel>, #tpu.dimension_semantics<parallel>], iteration_bounds = array<i64: 2, 1>, scalar_prefetch = 0 : i64, scratch_operands = 0 : i64, tpu.core_type = #tpu.core_type<tc>, window_params = [{transform_indices = @transform_0, window_bounds = array<i64: 32, 16>}, {transform_indices = @transform_1, window_bounds = array<i64: 32, 16>}, {pipeline_mode = #tpu.pipeline_mode<synchronous>, transform_indices = @transform_2, window_bounds = array<i64: 16, 256>}, {pipeline_mode = #tpu.pipeline_mode<synchronous>, transform_indices = @transform_3, window_bounds = array<i64: 16, 256>}, {transform_indices = @transform_4, window_bounds = array<i64: 1, 32, 256>}]} {
    %c0_i32 = arith.constant 0 : i32
    %0 = arith.cmpi eq, %arg0, %c0_i32 : i32
    %1 = arith.extui %0 : i1 to i32
    %c0_i32_0 = arith.constant 0 : i32
    %2 = arith.cmpi ne, %1, %c0_i32_0 : i32
    scf.if %2 {
      %c0 = arith.constant 0 : index
      %c0_2 = arith.constant 0 : index
      %6 = vector.load %arg2[%c0, %c0_2] : memref<32x16xf32, #tpu.memory_space<vmem>>, vector<32x16xf32>
      %c0_3 = arith.constant 0 : index
      %c0_4 = arith.constant 0 : index
      %7 = vector.load %arg4[%c0_3, %c0_4] : memref<16x256xf32, #tpu.memory_space<vmem>>, vector<16x256xf32>
      %cst = arith.constant dense<0.000000e+00> : vector<32x256xf32>
      %8 = tpu.matmul %6, %7, %cst {dimension_numbers = #tpu.dot_dimension_numbers<[1], [0], [0], [1], [0, 0, 1, 1], [], []>, precision = #tpu.contract_precision<fp32>} : vector<32x16xf32>, vector<16x256xf32>, vector<32x256xf32> -> vector<32x256xf32>
      %c0_5 = arith.constant 0 : index
      %c0_6 = arith.constant 0 : index
      %c0_7 = arith.constant 0 : index
      %9 = vector.load %arg6[%c0_5, %c0_6, %c0_7] : memref<1x32x256xf32, #tpu.memory_space<vmem>>, vector<1x32x256xf32>
      %10 = vector.shape_cast %9 : vector<1x32x256xf32> to vector<32x256xf32>
      %11 = vector.shape_cast %8 : vector<32x256xf32> to vector<1x32x256xf32>
      tpu.vector_store %arg6[%c0_5, %c0_6, %c0_7], %11 {strides = array<i32>} : memref<1x32x256xf32, #tpu.memory_space<vmem>>, vector<1x32x256xf32>,
    } else {
    }
    %c1_i32 = arith.constant 1 : i32
    %3 = arith.cmpi eq, %arg0, %c1_i32 : i32
    %4 = arith.extui %3 : i1 to i32
    %c0_i32_1 = arith.constant 0 : i32
    %5 = arith.cmpi ne, %4, %c0_i32_1 : i32
    scf.if %5 {
      %c0 = arith.constant 0 : index
      %c0_2 = arith.constant 0 : index
      %6 = vector.load %arg3[%c0, %c0_2] : memref<32x16xf32, #tpu.memory_space<vmem>>, vector<32x16xf32>
      %c0_3 = arith.constant 0 : index
      %c0_4 = arith.constant 0 : index
      %7 = vector.load %arg5[%c0_3, %c0_4] : memref<16x256xf32, #tpu.memory_space<vmem>>, vector<16x256xf32>
      %cst = arith.constant dense<0.000000e+00> : vector<32x256xf32>
      %8 = tpu.matmul %6, %7, %cst {dimension_numbers = #tpu.dot_dimension_numbers<[1], [0], [0], [1], [0, 0, 1, 1], [], []>, precision = #tpu.contract_precision<fp32>} : vector<32x16xf32>, vector<16x256xf32>, vector<32x256xf32> -> vector<32x256xf32>
      %c0_5 = arith.constant 0 : index
      %c0_6 = arith.constant 0 : index
      %c0_7 = arith.constant 0 : index
      %9 = vector.load %arg6[%c0_5, %c0_6, %c0_7] : memref<1x32x256xf32, #tpu.memory_space<vmem>>, vector<1x32x256xf32>
      %10 = vector.shape_cast %9 : vector<1x32x256xf32> to vector<32x256xf32>
      %11 = vector.shape_cast %8 : vector<32x256xf32> to vector<1x32x256xf32>
      tpu.vector_store %arg6[%c0_5, %c0_6, %c0_7], %11 {strides = array<i32>} : memref<1x32x256xf32, #tpu.memory_space<vmem>>, vector<1x32x256xf32>,
    } else {
    }
    return
  }
  func.func @transform_0(%arg0: i32, %arg1: i32) -> (i32, i32) {
    %c0_i32 = arith.constant 0 : i32
    %c0_i32_0 = arith.constant 0 : i32
    return %arg1, %c0_i32 : i32, i32
  }
  func.func @transform_1(%arg0: i32, %arg1: i32) -> (i32, i32) {
    %c0_i32 = arith.constant 0 : i32
    %c0_i32_0 = arith.constant 0 : i32
    return %arg1, %c0_i32 : i32, i32
  }
  func.func @transform_2(%arg0: i32, %arg1: i32) -> (i32, i32) {
    %c0_i32 = arith.constant 0 : i32
    %c0_i32_0 = arith.constant 0 : i32
    %c0_i32_1 = arith.constant 0 : i32
    return %c0_i32, %c0_i32_0 : i32, i32
  }
  func.func @transform_3(%arg0: i32, %arg1: i32) -> (i32, i32) {
    %c0_i32 = arith.constant 0 : i32
    %c0_i32_0 = arith.constant 0 : i32
    %c0_i32_1 = arith.constant 0 : i32
    return %c0_i32, %c0_i32_0 : i32, i32
  }
  func.func @transform_4(%arg0: i32, %arg1: i32) -> (i32, i32, i32) {
    %c0_i32 = arith.constant 0 : i32
    %c0_i32_0 = arith.constant 0 : i32
    return %arg0, %arg1, %c0_i32 : i32, i32, i32
  }
}

</mosaic_0001>

<llo_original>
// kernel: tpu_custom_call.1
$region0: #{tpu_custom_call.1}
  #allocation0 [shape = 'u32[]', space=smem, size = 0x4, offset = 0x4, fixed_abs, tag = 'smem constant byte address 0x4 - core index']
  #allocation1 [shape = 'u32[144,128]{1,0:T(1,128)}', space=vmem, size = 0x12000, scoped, tag = 'internal scratch']
  %s0 = inlined_call_operand.vmem [shape: f32[32,16], index: 0, kind: input, shape index: {}]
  %s1 = inlined_call_operand.vmem [shape: f32[32,16], index: 1, kind: input, shape index: {}]
  %s2 = inlined_call_operand.vmem [shape: f32[16,256], index: 2, kind: input, shape index: {}]
  %s3 = inlined_call_operand.vmem [shape: f32[16,256], index: 3, kind: input, shape index: {}]
  %s4 = inlined_call_operand.hbm [shape: f32[2,32,256], index: 4, kind: output, shape index: {}]
  %s5 = sld [smem:[#allocation0]]
  $region57: #{tpu_custom_call.1} parent=0
    _
  %s7 = ssub.s32 1, %s5
  %s8 = scalar_select 0, %s7, %s5
  $region1: #{tpu_custom_call.1} parent=0
    #allocation2 [shape = 'u8[65536]{0}', space=vmem, size = 0x10000, scoped, tag = 'output window, operand 0']
    #allocation3 [shape = 's32[2]{0}', space=sflag, size = 0x8, scoped, tag = 'scoped memory for tpu_custom_call.1']
    %9 = vsyncpa [#allocation3], 0
    %s10 = scalar_lea.sflag [#allocation3], 1
    %11 = vsyncpa %s10, 0
    loop: start=0, step=1, limit=4
    $region2: #{tpu_custom_call.1} parent=1 // loop_pre_header
      _
    $region3: #{tpu_custom_call.1} parent=1 // loop_header
      %s13 = sphi 0, %s17
      %p14 = scmp.ge.s32.totalorder %s13, 4
      %s20 = sphi 0, %s32
      %s21 = sphi 0, %s28
      %s22 = sphi 0, %s20
      %s23 = sphi 0, %s21
      %s24 = sphi 0, %s22
      %s25 = sphi 0, %s23
      %s35 = sphi 0, %s37
      %s38 = sphi 0, %s35
      %s39 = sphi 0, %s38
      %s55 = sphi 0, %s39
      %s61 = sphi 0, %s63
      %s64 = sphi 0, %s61
      %s65 = sphi 0, %s64
      %s81 = sphi 0, %s65
      %s85 = sphi 0, %s85
      %s87 = sphi 0, %s85
      %s88 = sphi 0, %s87
      %s102 = sphi 0, %s88
      %s106 = sphi 0, %s106
      %s108 = sphi 0, %s106
      %s109 = sphi 0, %s108
      %s123 = sphi 0, %s109
      %s131 = sphi 0, %s133
      %s134 = sphi 0, %s131
      %s135 = sphi 0, %s134
      %s151 = sphi 0, %s135
    $region4: #{tpu_custom_call.1} parent=1 // loop_header_branch
      %16 = sbr.rel (%p14) target = $region8
    $region5: #{tpu_custom_call.1} parent=1 // loop_body
      %s18 = ssub.s32 %s13, 1
      %s19 = ssub.s32 %s13, 2
      %s26 = sadd.s32 1, %s21
      %p27 = scmp.ge.s32.totalorder %s26, 1
      %s28 = scalar_select %p27, 0, %s26
      %s29 = sadd.s32 1, %s20
      %s30 = scalar_select %p27, %s29, %s20
      %p31 = scmp.ge.s32.totalorder %s30, 2
      %s32 = scalar_select %p31, 0, %s30
      %s33 = ssub.s32 %s21, %s28
      %p34 = scmp.eq.s32.totalorder %s33, 0
      %s36 = sadd.s32 %s35, 1
      %s37 = scalar_select %p34, %s35, %s36
      %p40 = pneg %p34
      %p41 = scmp.eq.s32.totalorder %s13, 1
      %p42 = por %p40, %p41
      %p43 = scmp.ne.s32.totalorder %s35, %s38
      %p44 = scmp.eq.s32.totalorder %s13, 0
      %p45 = por %p43, %p44
      %p46 = scmp.ne.s32.totalorder %s35, %s38
      %p47 = scmp.eq.s32.totalorder %s18, 1
      %p48 = por %p46, %p47
      %p49 = scmp.ne.s32.totalorder %s38, %s39
      %p50 = scmp.eq.s32.totalorder %s18, 0
      %p51 = por %p49, %p50
      %p52 = scmp.ne.s32.totalorder %s38, %s39
      %p53 = scmp.eq.s32.totalorder %s19, 1
      %p54 = por %p52, %p53
      %p56 = scmp.ne.s32.totalorder %s39, %s55
      %p57 = scmp.eq.s32.totalorder %s19, 0
      %p58 = por %p56, %p57
      %s59 = ssub.s32 %s21, %s28
      %p60 = scmp.eq.s32.totalorder %s59, 0
      %s62 = sadd.s32 %s61, 1
      %s63 = scalar_select %p60, %s61, %s62
      %p66 = pneg %p60
      %p67 = scmp.eq.s32.totalorder %s13, 1
      %p68 = por %p66, %p67
      %p69 = scmp.ne.s32.totalorder %s61, %s64
      %p70 = scmp.eq.s32.totalorder %s13, 0
      %p71 = por %p69, %p70
      %p72 = scmp.ne.s32.totalorder %s61, %s64
      %p73 = scmp.eq.s32.totalorder %s18, 1
      %p74 = por %p72, %p73
      %p75 = scmp.ne.s32.totalorder %s64, %s65
      %p76 = scmp.eq.s32.totalorder %s18, 0
      %p77 = por %p75, %p76
      %p78 = scmp.ne.s32.totalorder %s64, %s65
      %p79 = scmp.eq.s32.totalorder %s19, 1
      %p80 = por %p78, %p79
      %p82 = scmp.ne.s32.totalorder %s65, %s81
      %p83 = scmp.eq.s32.totalorder %s19, 0
      %p84 = por %p82, %p83
      %s86 = sadd.s32 %s85, 1
      %p89 = scmp.eq.s32.totalorder %s13, 1
      %p90 = scmp.ne.s32.totalorder %s85, %s87
      %p91 = scmp.eq.s32.totalorder %s13, 0
      %p92 = por %p90, %p91
      %p93 = scmp.ne.s32.totalorder %s85, %s87
      %p94 = scmp.eq.s32.totalorder %s18, 1
      %p95 = por %p93, %p94
      %p96 = scmp.ne.s32.totalorder %s87, %s88
      %p97 = scmp.eq.s32.totalorder %s18, 0
      %p98 = por %p96, %p97
      %p99 = scmp.ne.s32.totalorder %s87, %s88
      %p100 = scmp.eq.s32.totalorder %s19, 1
      %p101 = por %p99, %p100
      %p103 = scmp.ne.s32.totalorder %s88, %s102
      %p104 = scmp.eq.s32.totalorder %s19, 0
      %p105 = por %p103, %p104
      %s107 = sadd.s32 %s106, 1
      %p110 = scmp.eq.s32.totalorder %s13, 1
      %p111 = scmp.ne.s32.totalorder %s106, %s108
      %p112 = scmp.eq.s32.totalorder %s13, 0
      %p113 = por %p111, %p112
      %p114 = scmp.ne.s32.totalorder %s106, %s108
      %p115 = scmp.eq.s32.totalorder %s18, 1
      %p116 = por %p114, %p115
      %p117 = scmp.ne.s32.totalorder %s108, %s109
      %p118 = scmp.eq.s32.totalorder %s18, 0
      %p119 = por %p117, %p118
      %p120 = scmp.ne.s32.totalorder %s108, %s109
      %p121 = scmp.eq.s32.totalorder %s19, 1
      %p122 = por %p120, %p121
      %p124 = scmp.ne.s32.totalorder %s109, %s123
      %p125 = scmp.eq.s32.totalorder %s19, 0
      %p126 = por %p124, %p125
      %s127 = ssub.s32 %s20, %s32
      %s128 = ssub.s32 %s21, %s28
      %s129 = sor.u32 %s127, %s128
      %p130 = scmp.eq.s32.totalorder %s129, 0
      %s132 = sadd.s32 %s131, 1
      %s133 = scalar_select %p130, %s131, %s132
      %p136 = pneg %p130
      %p137 = scmp.eq.s32.totalorder %s13, 1
      %p138 = por %p136, %p137
      %p139 = scmp.ne.s32.totalorder %s131, %s134
      %p140 = scmp.eq.s32.totalorder %s13, 0
      %p141 = por %p139, %p140
      %p142 = scmp.ne.s32.totalorder %s131, %s134
      %p143 = scmp.eq.s32.totalorder %s18, 1
      %p144 = por %p142, %p143
      %p145 = scmp.ne.s32.totalorder %s134, %s135
      %p146 = scmp.eq.s32.totalorder %s18, 0
      %p147 = por %p145, %p146
      %p148 = scmp.ne.s32.totalorder %s134, %s135
      %p149 = scmp.eq.s32.totalorder %s19, 1
      %p150 = por %p148, %p149
      %p152 = scmp.ne.s32.totalorder %s135, %s151
      %p153 = scmp.eq.s32.totalorder %s19, 0
      %p154 = por %p152, %p153
      %p155 = scmp.le.s32.totalorder 1, %s13
      %p156 = scmp.lt.s32.totalorder %s13, 3
      %p157 = pnand %p155, %p156
      %p158 = pneg %p157
      // Predicated region
      $region9: #{tpu_custom_call.1} parent=5 // pred_check
        _
      $region10: #{tpu_custom_call.1} parent=5 // pred_check_branch
        %160 = sbr.rel (%p157) target = $region12
      $region11: #{tpu_custom_call.1} parent=5 // pred_region
        %s161 = ssub.s32 %s13, 1
        // Predicated region
        $region13: #{tpu_custom_call.1} parent=11 // pred_check
          %p162 = pneg %p51
        $region14: #{tpu_custom_call.1} parent=11 // pred_check_branch
          %164 = sbr.rel (%p162) target = $region16
        $region15: #{tpu_custom_call.1} parent=11 // pred_region
          %s165 = smul.u32 4, %s23
          %p166 = scmp.lt.s32.totalorder %s165, 3
          %s167 = scalar_select %p166, %s165, 3
          %s168 = smul.addr %s167, 8
          %s169 = scalar_lea.vmem %s0, %s168
          %s170 = smul.u32 4, %s23
        $region16: #{tpu_custom_call.1} parent=11 // pred_fallthru
          _
        // Predicated region
        $region17: #{tpu_custom_call.1} parent=11 // pred_check
          %p171 = pneg %p77
        $region18: #{tpu_custom_call.1} parent=11 // pred_check_branch
          %173 = sbr.rel (%p171) target = $region20
        $region19: #{tpu_custom_call.1} parent=11 // pred_region
          %s174 = smul.u32 4, %s23
          %p175 = scmp.lt.s32.totalorder %s174, 3
          %s176 = scalar_select %p175, %s174, 3
          %s177 = smul.addr %s176, 8
          %s178 = scalar_lea.vmem %s1, %s177
          %s179 = smul.u32 4, %s23
        $region20: #{tpu_custom_call.1} parent=11 // pred_fallthru
          _
        // Predicated region
        $region21: #{tpu_custom_call.1} parent=11 // pred_check
          %p180 = pneg %p98
        $region22: #{tpu_custom_call.1} parent=11 // pred_check_branch
          %182 = sbr.rel (%p180) target = $region24
        $region23: #{tpu_custom_call.1} parent=11 // pred_region
          _
        $region24: #{tpu_custom_call.1} parent=11 // pred_fallthru
          _
        // Predicated region
        $region25: #{tpu_custom_call.1} parent=11 // pred_check
          %p183 = pneg %p119
        $region26: #{tpu_custom_call.1} parent=11 // pred_check_branch
          %185 = sbr.rel (%p183) target = $region28
        $region27: #{tpu_custom_call.1} parent=11 // pred_region
          _
        $region28: #{tpu_custom_call.1} parent=11 // pred_fallthru
          _
      $region12: #{tpu_custom_call.1} parent=5 // pred_fallthru
        _
      %p186 = scmp.lt.s32.totalorder %s13, 2
      // Predicated region
      $region29: #{tpu_custom_call.1} parent=5 // pred_check
        %p187 = pneg %p186
      $region30: #{tpu_custom_call.1} parent=5 // pred_check_branch
        %189 = sbr.rel (%p187) target = $region32
      $region31: #{tpu_custom_call.1} parent=5 // pred_region
        _
      $region32: #{tpu_custom_call.1} parent=5 // pred_fallthru
        _
      %p190 = scmp.le.s32.totalorder 1, %s13
      %p191 = scmp.lt.s32.totalorder %s13, 3
      %p192 = pnand %p190, %p191
      %p193 = pneg %p192
      // Predicated region
      $region33: #{tpu_custom_call.1} parent=5 // pred_check
        _
      $region34: #{tpu_custom_call.1} parent=5 // pred_check_branch
        %195 = sbr.rel (%p192) target = $region36
      $region35: #{tpu_custom_call.1} parent=5 // pred_region
        %s196 = ssub.s32 %s13, 1
        %s197 = smul.u32 4, %s23
        %p198 = scmp.lt.s32.totalorder %s197, 3
        %s199 = scalar_select %p198, %s197, 3
        %s200 = smul.addr %s199, 8
        %s201 = scalar_lea.vmem %s0, %s200
        %p202 = pneg %p51
        %p203 = pneg %p48
        %s204 = smul.u32 4, %s23
        %p205 = scmp.lt.s32.totalorder %s204, 3
        %s206 = scalar_select %p205, %s204, 3
        %s207 = smul.addr %s206, 8
        %s208 = scalar_lea.vmem %s1, %s207
        %p209 = pneg %p77
        %p210 = pneg %p74
        %p211 = pneg %p98
        %p212 = pneg %p95
        %p213 = pneg %p119
        %p214 = pneg %p116
        %p215 = pneg %p147
        %p216 = pneg %p144
        %s217 = sand.u32 %s134, 1
        %s218 = scalar_lea.sflag [#allocation3], %s217
        %s219 = sand.u32 %s134, 1
        %s220 = smul.addr %s219, 64
        %s221 = scalar_lea.vmem [#allocation2], %s220
        %s222 = smul.u32 4, %s23
        %p223 = scmp.lt.s32.totalorder %s222, 3
        %s224 = scalar_select %p223, %s222, 3
        %s225 = smul.addr %s224, 8
        %s226 = scalar_lea.vmem %s0, %s225
        %s227 = smul.u32 4, %s23
        %s228 = smul.u32 4, %s23
        %p229 = scmp.lt.s32.totalorder %s228, 3
        %s230 = scalar_select %p229, %s228, 3
        %s231 = smul.addr %s230, 8
        %s232 = scalar_lea.vmem %s1, %s231
        %s233 = smul.u32 4, %s23
        %s234 = smul.u32 4, %s23
        %p235 = scmp.eq.s32.totalorder %s22, 0
        // Predicated region
        $region37: #{tpu_custom_call.1} parent=35 // pred_check
          %p236 = pneg %p235
        $region38: #{tpu_custom_call.1} parent=35 // pred_check_branch
          %238 = sbr.rel (%p236) target = $region40
        $region39: #{tpu_custom_call.1} parent=35 // pred_region
          %v239 = vld [vmem:[%s226] sm:$0xff]
          %v240 = vld [vmem:[%s226 + $0x8] sm:$0xff]
          %v241 = vld [vmem:[%s226 + $0x10] sm:$0xff]
          %v242 = vld [vmem:[%s226 + $0x18] sm:$0xff]
          %v243 = vld [vmem:[%s2] sm:$0xff]
          %v244 = vld [vmem:[%s2 + $0x8] sm:$0xff]
          %v245 = vld [vmem:[%s2 + $0x10] sm:$0xff]
          %v246 = vld [vmem:[%s2 + $0x18] sm:$0xff]
          %vm247 = vcmask 130048
          %v249 = vsel %vm247, %v239, 0
          %v252 = vsel %vm247, %v240, 0
          %v255 = vsel %vm247, %v241, 0
          %v258 = vsel %vm247, %v242, 0
          %260 = vmatprep.subr.mxu0 0.0
          %261 = vmatpush1.msra.mxu0 0.0
          %262 = vmatprep.subr.mxu0 0.0
          %263 = vmatpush1.msra.mxu0 0.0
          %264 = vmatprep.subr.mxu0 0.0
          %265 = vmatpush1.msra.mxu0 0.0
          %266 = vmatprep.subr.mxu0 0.0
          %267 = vmatpush1.msra.mxu0 0.0
          %268 = vmatprep.subr.mxu0 0.0
          %269 = vmatpush1.msra.mxu0 0.0
          %270 = vmatprep.subr.mxu0 0.0
          %271 = vmatpush1.msra.mxu0 0.0
          %272 = vmatprep.subr.mxu0 0.0
          %273 = vmatpush1.msra.mxu0 0.0
          %274 = vmatprep.subr.mxu0 0.0
          %275 = vmatpush1.msra.mxu0 0.0
          %276 = vmatprep.subr.mxu0 0.0
          %277 = vmatpush1.msra.mxu0 0.0
          %278 = vmatprep.subr.mxu0 0.0
          %279 = vmatpush1.msra.mxu0 0.0
          %280 = vmatprep.subr.mxu0 0.0
          %281 = vmatpush1.msra.mxu0 0.0
          %282 = vmatprep.subr.mxu0 0.0
          %283 = vmatpush1.msra.mxu0 0.0
          %284 = vmatprep.subr.mxu0 0.0
          %285 = vmatpush1.msra.mxu0 0.0
          %286 = vmatprep.subr.mxu0 0.0
          %287 = vmatpush1.msra.mxu0 0.0
          %v288 = vand.u32 %v246, 4294901760
          %289 = vmatprep.subr.mxu0 %v288
          %v290 = vand.u32 %v245, 4294901760
          %291 = vmatpush1.msra.mxu0 %v290
          %v292 = vand.u32 %v244, 4294901760
          %293 = vmatprep.subr.mxu0 %v292
          %v294 = vand.u32 %v243, 4294901760
          %295 = vmatpush1.msra.mxu0 %v294
          %296 = vmatprep.subr.mxu0 0.0
          %297 = vmatpush2.msra.mxu0 0.0
          %298 = vmatprep.subr.mxu0 0.0
          %299 = vmatpush2.msra.mxu0 0.0
          %300 = vmatprep.subr.mxu0 0.0
          %301 = vmatpush2.msra.mxu0 0.0
          %302 = vmatprep.subr.mxu0 0.0
          %303 = vmatpush2.msra.mxu0 0.0
          %304 = vmatprep.subr.mxu0 0.0
          %305 = vmatpush2.msra.mxu0 0.0
          %306 = vmatprep.subr.mxu0 0.0
          %307 = vmatpush2.msra.mxu0 0.0
          %308 = vmatprep.subr.mxu0 0.0
          %309 = vmatpush2.msra.mxu0 0.0
          %310 = vmatprep.subr.mxu0 0.0
          %311 = vmatpush2.msra.mxu0 0.0
          %312 = vmatprep.subr.mxu0 0.0
          %313 = vmatpush2.msra.mxu0 0.0
          %314 = vmatprep.subr.mxu0 0.0
          %315 = vmatpush2.msra.mxu0 0.0
          %316 = vmatprep.subr.mxu0 0.0
          %317 = vmatpush2.msra.mxu0 0.0
          %318 = vmatprep.subr.mxu0 0.0
          %319 = vmatpush2.msra.mxu0 0.0
          %320 = vmatprep.subr.mxu0 0.0
          %321 = vmatpush2.msra.mxu0 0.0
          %322 = vmatprep.subr.mxu0 0.0
          %323 = vmatpush2.msra.mxu0 0.0
          %324 = vmatprep.subr.mxu0 0.0
          %325 = vmatpush2.msra.mxu0 0.0
          %326 = vmatprep.subr.mxu0 0.0
          %327 = vmatpush2.msra.mxu0 0.0
          %328 = vmatprep.mubr.f32.mxu0 0.0
          %v329 = vand.u32 %v249, 4294901760
          %v330 = vsub.f32 %v249, %v329
          %v331 = vand.u32 %v330, 4294901760
          %v332 = vsub.f32 %v330, %v331
          %v333 = vand.u32 %v332, 4294901760
          %334 = vmatmul.mubr.f32.gmra.mxu0 %v333
          %v335 = vpop.f32.mrf.mxu0
          %v336 = vadd.f32 0.0, %v335
          %v337 = vpop.f32.mrf.mxu0
          %v338 = vadd.f32 0.0, %v337
          %339 = vmatprep.mubr.f32.mxu0 0.0
          %v340 = vand.u32 %v252, 4294901760
          %v341 = vsub.f32 %v252, %v340
          %v342 = vand.u32 %v341, 4294901760
          %v343 = vsub.f32 %v341, %v342
          %v344 = vand.u32 %v343, 4294901760
          %345 = vmatmul.mubr.f32.gmra.mxu0 %v344
          %v346 = vpop.f32.mrf.mxu0
          %v347 = vadd.f32 0.0, %v346
          %v348 = vpop.f32.mrf.mxu0
          %v349 = vadd.f32 0.0, %v348
          %350 = vmatprep.mubr.f32.mxu0 0.0
          %v351 = vand.u32 %v255, 4294901760
          %v352 = vsub.f32 %v255, %v351
          %v353 = vand.u32 %v352, 4294901760
          %v354 = vsub.f32 %v352, %v353
          %v355 = vand.u32 %v354, 4294901760
          %356 = vmatmul.mubr.f32.gmra.mxu0 %v355
          %v357 = vpop.f32.mrf.mxu0
          %v358 = vadd.f32 0.0, %v357
          %v359 = vpop.f32.mrf.mxu0
          %v360 = vadd.f32 0.0, %v359
          %361 = vmatprep.mubr.f32.mxu0 0.0
          %v362 = vand.u32 %v258, 4294901760
          %v363 = vsub.f32 %v258, %v362
          %v364 = vand.u32 %v363, 4294901760
          %v365 = vsub.f32 %v363, %v364
          %v366 = vand.u32 %v365, 4294901760
          %367 = vmatmul.mubr.f32.gmra.mxu0 %v366
          %v368 = vpop.f32.mrf.mxu0
          %v369 = vadd.f32 0.0, %v368
          %v370 = vpop.f32.mrf.mxu0
          %v371 = vadd.f32 0.0, %v370
          %372 = vdwg.mxu0
          %373 = vmatprep.subr.mxu0 0.0
          %374 = vmatpush1.msra.mxu0 0.0
          %375 = vmatprep.subr.mxu0 0.0
          %376 = vmatpush1.msra.mxu0 0.0
          %377 = vmatprep.subr.mxu0 0.0
          %378 = vmatpush1.msra.mxu0 0.0
          %379 = vmatprep.subr.mxu0 0.0
          %380 = vmatpush1.msra.mxu0 0.0
          %381 = vmatprep.subr.mxu0 0.0
          %382 = vmatpush1.msra.mxu0 0.0
          %383 = vmatprep.subr.mxu0 0.0
          %384 = vmatpush1.msra.mxu0 0.0
          %385 = vmatprep.subr.mxu0 0.0
          %386 = vmatpush1.msra.mxu0 0.0
          %387 = vmatprep.subr.mxu0 0.0
          %388 = vmatpush1.msra.mxu0 0.0
          %389 = vmatprep.subr.mxu0 0.0
          %390 = vmatpush1.msra.mxu0 0.0
          %391 = vmatprep.subr.mxu0 0.0
          %392 = vmatpush1.msra.mxu0 0.0
          %393 = vmatprep.subr.mxu0 0.0
          %394 = vmatpush1.msra.mxu0 0.0
          %395 = vmatprep.subr.mxu0 0.0
          %396 = vmatpush1.msra.mxu0 0.0
          %397 = vmatprep.subr.mxu0 0.0
          %398 = vmatpush1.msra.mxu0 0.0
          %399 = vmatprep.subr.mxu0 0.0
          %400 = vmatpush1.msra.mxu0 0.0
          %v401 = vand.u32 %v246, 4294901760
          %v402 = vsub.f32 %v246, %v401
          %v403 = vand.u32 %v402, 4294901760
          %v404 = vsub.f32 %v402, %v403
          %v405 = vand.u32 %v404, 4294901760
          %406 = vmatprep.subr.mxu0 %v405
          %v407 = vand.u32 %v245, 4294901760
          %v408 = vsub.f32 %v245, %v407
          %v409 = vand.u32 %v408, 4294901760
          %v410 = vsub.f32 %v408, %v409
          %v411 = vand.u32 %v410, 4294901760
          %412 = vmatpush1.msra.mxu0 %v411
          %v413 = vand.u32 %v244, 4294901760
          %v414 = vsub.f32 %v244, %v413
          %v415 = vand.u32 %v414, 4294901760
          %v416 = vsub.f32 %v414, %v415
          %v417 = vand.u32 %v416, 4294901760
          %418 = vmatprep.subr.mxu0 %v417
          %v419 = vand.u32 %v243, 4294901760
          %v420 = vsub.f32 %v243, %v419
          %v421 = vand.u32 %v420, 4294901760
          %v422 = vsub.f32 %v420, %v421
          %v423 = vand.u32 %v422, 4294901760
          %424 = vmatpush1.msra.mxu0 %v423
          %425 = vmatprep.subr.mxu0 0.0
          %426 = vmatpush2.msra.mxu0 0.0
          %427 = vmatprep.subr.mxu0 0.0
          %428 = vmatpush2.msra.mxu0 0.0
          %429 = vmatprep.subr.mxu0 0.0
          %430 = vmatpush2.msra.mxu0 0.0
          %431 = vmatprep.subr.mxu0 0.0
          %432 = vmatpush2.msra.mxu0 0.0
          %433 = vmatprep.subr.mxu0 0.0
          %434 = vmatpush2.msra.mxu0 0.0
          %435 = vmatprep.subr.mxu0 0.0
          %436 = vmatpush2.msra.mxu0 0.0
          %437 = vmatprep.subr.mxu0 0.0
          %438 = vmatpush2.msra.mxu0 0.0
          %439 = vmatprep.subr.mxu0 0.0
          %440 = vmatpush2.msra.mxu0 0.0
          %441 = vmatprep.subr.mxu0 0.0
          %442 = vmatpush2.msra.mxu0 0.0
          %443 = vmatprep.subr.mxu0 0.0
          %444 = vmatpush2.msra.mxu0 0.0
          %445 = vmatprep.subr.mxu0 0.0
          %446 = vmatpush2.msra.mxu0 0.0
          %447 = vmatprep.subr.mxu0 0.0
          %448 = vmatpush2.msra.mxu0 0.0
          %449 = vmatprep.subr.mxu0 0.0
          %450 = vmatpush2.msra.mxu0 0.0
          %451 = vmatprep.subr.mxu0 0.0
          %452 = vmatpush2.msra.mxu0 0.0
          %453 = vmatprep.subr.mxu0 0.0
          %454 = vmatpush2.msra.mxu0 0.0
          %455 = vmatprep.subr.mxu0 0.0
          %456 = vmatpush2.msra.mxu0 0.0
          %457 = vmatprep.mubr.f32.mxu0 0.0
          %v458 = vand.u32 %v249, 4294901760
          %459 = vmatmul.mubr.f32.gmra.mxu0 %v458
          %v460 = vpop.f32.mrf.mxu0
          %v461 = vadd.f32 %v336, %v460
          %v462 = vpop.f32.mrf.mxu0
          %v463 = vadd.f32 %v338, %v462
          %464 = vmatprep.mubr.f32.mxu0 0.0
          %v465 = vand.u32 %v252, 4294901760
          %466 = vmatmul.mubr.f32.gmra.mxu0 %v465
          %v467 = vpop.f32.mrf.mxu0
          %v468 = vadd.f32 %v347, %v467
          %v469 = vpop.f32.mrf.mxu0
          %v470 = vadd.f32 %v349, %v469
          %471 = vmatprep.mubr.f32.mxu0 0.0
          %v472 = vand.u32 %v255, 4294901760
          %473 = vmatmul.mubr.f32.gmra.mxu0 %v472
          %v474 = vpop.f32.mrf.mxu0
          %v475 = vadd.f32 %v358, %v474
          %v476 = vpop.f32.mrf.mxu0
          %v477 = vadd.f32 %v360, %v476
          %478 = vmatprep.mubr.f32.mxu0 0.0
          %v479 = vand.u32 %v258, 4294901760
          %480 = vmatmul.mubr.f32.gmra.mxu0 %v479
          %v481 = vpop.f32.mrf.mxu0
          %v482 = vadd.f32 %v369, %v481
          %v483 = vpop.f32.mrf.mxu0
          %v484 = vadd.f32 %v371, %v483
          %485 = vdwg.mxu0
          %486 = vmatprep.subr.mxu0 0.0
          %487 = vmatpush1.msra.mxu0 0.0
          %488 = vmatprep.subr.mxu0 0.0
          %489 = vmatpush1.msra.mxu0 0.0
          %490 = vmatprep.subr.mxu0 0.0
          %491 = vmatpush1.msra.mxu0 0.0
          %492 = vmatprep.subr.mxu0 0.0
          %493 = vmatpush1.msra.mxu0 0.0
          %494 = vmatprep.subr.mxu0 0.0
          %495 = vmatpush1.msra.mxu0 0.0
          %496 = vmatprep.subr.mxu0 0.0
          %497 = vmatpush1.msra.mxu0 0.0
          %498 = vmatprep.subr.mxu0 0.0
          %499 = vmatpush1.msra.mxu0 0.0
          %500 = vmatprep.subr.mxu0 0.0
          %501 = vmatpush1.msra.mxu0 0.0
          %502 = vmatprep.subr.mxu0 0.0
          %503 = vmatpush1.msra.mxu0 0.0
          %504 = vmatprep.subr.mxu0 0.0
          %505 = vmatpush1.msra.mxu0 0.0
          %506 = vmatprep.subr.mxu0 0.0
          %507 = vmatpush1.msra.mxu0 0.0
          %508 = vmatprep.subr.mxu0 0.0
          %509 = vmatpush1.msra.mxu0 0.0
          %510 = vmatprep.subr.mxu0 0.0
          %511 = vmatpush1.msra.mxu0 0.0
          %512 = vmatprep.subr.mxu0 0.0
          %513 = vmatpush1.msra.mxu0 0.0
          %v514 = vand.u32 %v246, 4294901760
          %v515 = vsub.f32 %v246, %v514
          %516 = vmatprep.subr.mxu0 %v515
          %v517 = vand.u32 %v245, 4294901760
          %v518 = vsub.f32 %v245, %v517
          %519 = vmatpush1.msra.mxu0 %v518
          %v520 = vand.u32 %v244, 4294901760
          %v521 = vsub.f32 %v244, %v520
          %522 = vmatprep.subr.mxu0 %v521
          %v523 = vand.u32 %v243, 4294901760
          %v524 = vsub.f32 %v243, %v523
          %525 = vmatpush1.msra.mxu0 %v524
          %526 = vmatprep.subr.mxu0 0.0
          %527 = vmatpush2.msra.mxu0 0.0
          %528 = vmatprep.subr.mxu0 0.0
          %529 = vmatpush2.msra.mxu0 0.0
          %530 = vmatprep.subr.mxu0 0.0
          %531 = vmatpush2.msra.mxu0 0.0
          %532 = vmatprep.subr.mxu0 0.0
          %533 = vmatpush2.msra.mxu0 0.0
          %534 = vmatprep.subr.mxu0 0.0
          %535 = vmatpush2.msra.mxu0 0.0
          %536 = vmatprep.subr.mxu0 0.0
          %537 = vmatpush2.msra.mxu0 0.0
          %538 = vmatprep.subr.mxu0 0.0
          %539 = vmatpush2.msra.mxu0 0.0
          %540 = vmatprep.subr.mxu0 0.0
          %541 = vmatpush2.msra.mxu0 0.0
          %542 = vmatprep.subr.mxu0 0.0
          %543 = vmatpush2.msra.mxu0 0.0
          %544 = vmatprep.subr.mxu0 0.0
          %545 = vmatpush2.msra.mxu0 0.0
          %546 = vmatprep.subr.mxu0 0.0
          %547 = vmatpush2.msra.mxu0 0.0
          %548 = vmatprep.subr.mxu0 0.0
          %549 = vmatpush2.msra.mxu0 0.0
          %550 = vmatprep.subr.mxu0 0.0
          %551 = vmatpush2.msra.mxu0 0.0
          %552 = vmatprep.subr.mxu0 0.0
          %553 = vmatpush2.msra.mxu0 0.0
          %554 = vmatprep.subr.mxu0 0.0
          %555 = vmatpush2.msra.mxu0 0.0
          %556 = vmatprep.subr.mxu0 0.0
          %557 = vmatpush2.msra.mxu0 0.0
          %558 = vmatprep.mubr.f32.mxu0 0.0
          %v559 = vand.u32 %v249, 4294901760
          %v560 = vsub.f32 %v249, %v559
          %561 = vmatmul.mubr.f32.gmra.mxu0 %v560
          %v562 = vpop.f32.mrf.mxu0
          %v563 = vadd.f32 %v461, %v562
          %v564 = vpop.f32.mrf.mxu0
          %v565 = vadd.f32 %v463, %v564
          %566 = vmatprep.mubr.f32.mxu0 0.0
          %v567 = vand.u32 %v252, 4294901760
          %v568 = vsub.f32 %v252, %v567
          %569 = vmatmul.mubr.f32.gmra.mxu0 %v568
          %v570 = vpop.f32.mrf.mxu0
          %v571 = vadd.f32 %v468, %v570
          %v572 = vpop.f32.mrf.mxu0
          %v573 = vadd.f32 %v470, %v572
          %574 = vmatprep.mubr.f32.mxu0 0.0
          %v575 = vand.u32 %v255, 4294901760
          %v576 = vsub.f32 %v255, %v575
          %577 = vmatmul.mubr.f32.gmra.mxu0 %v576
          %v578 = vpop.f32.mrf.mxu0
          %v579 = vadd.f32 %v475, %v578
          %v580 = vpop.f32.mrf.mxu0
          %v581 = vadd.f32 %v477, %v580
          %582 = vmatprep.mubr.f32.mxu0 0.0
          %v583 = vand.u32 %v258, 4294901760
          %v584 = vsub.f32 %v258, %v583
          %585 = vmatmul.mubr.f32.gmra.mxu0 %v584
          %v586 = vpop.f32.mrf.mxu0
          %v587 = vadd.f32 %v482, %v586
          %v588 = vpop.f32.mrf.mxu0
          %v589 = vadd.f32 %v484, %v588
          %590 = vdwg.mxu0
          %591 = vmatprep.subr.mxu0 0.0
          %592 = vmatpush1.msra.mxu0 0.0
          %593 = vmatprep.subr.mxu0 0.0
          %594 = vmatpush1.msra.mxu0 0.0
          %595 = vmatprep.subr.mxu0 0.0
          %596 = vmatpush1.msra.mxu0 0.0
          %597 = vmatprep.subr.mxu0 0.0
          %598 = vmatpush1.msra.mxu0 0.0
          %599 = vmatprep.subr.mxu0 0.0
          %600 = vmatpush1.msra.mxu0 0.0
          %601 = vmatprep.subr.mxu0 0.0
          %602 = vmatpush1.msra.mxu0 0.0
          %603 = vmatprep.subr.mxu0 0.0
          %604 = vmatpush1.msra.mxu0 0.0
          %605 = vmatprep.subr.mxu0 0.0
          %606 = vmatpush1.msra.mxu0 0.0
          %607 = vmatprep.subr.mxu0 0.0
          %608 = vmatpush1.msra.mxu0 0.0
          %609 = vmatprep.subr.mxu0 0.0
          %610 = vmatpush1.msra.mxu0 0.0
          %611 = vmatprep.subr.mxu0 0.0
          %612 = vmatpush1.msra.mxu0 0.0
          %613 = vmatprep.subr.mxu0 0.0
          %614 = vmatpush1.msra.mxu0 0.0
          %615 = vmatprep.subr.mxu0 0.0
          %616 = vmatpush1.msra.mxu0 0.0
          %617 = vmatprep.subr.mxu0 0.0
          %618 = vmatpush1.msra.mxu0 0.0
          %v619 = vand.u32 %v246, 4294901760
          %620 = vmatprep.subr.mxu0 %v619
          %v621 = vand.u32 %v245, 4294901760
          %622 = vmatpush1.msra.mxu0 %v621
          %v623 = vand.u32 %v244, 4294901760
          %624 = vmatprep.subr.mxu0 %v623
          %v625 = vand.u32 %v243, 4294901760
          %626 = vmatpush1.msra.mxu0 %v625
          %627 = vmatprep.subr.mxu0 0.0
          %628 = vmatpush2.msra.mxu0 0.0
          %629 = vmatprep.subr.mxu0 0.0
          %630 = vmatpush2.msra.mxu0 0.0
          %631 = vmatprep.subr.mxu0 0.0
          %632 = vmatpush2.msra.mxu0 0.0
          %633 = vmatprep.subr.mxu0 0.0
          %634 = vmatpush2.msra.mxu0 0.0
          %635 = vmatprep.subr.mxu0 0.0
          %636 = vmatpush2.msra.mxu0 0.0
          %637 = vmatprep.subr.mxu0 0.0
          %638 = vmatpush2.msra.mxu0 0.0
          %639 = vmatprep.subr.mxu0 0.0
          %640 = vmatpush2.msra.mxu0 0.0
          %641 = vmatprep.subr.mxu0 0.0
          %642 = vmatpush2.msra.mxu0 0.0
          %643 = vmatprep.subr.mxu0 0.0
          %644 = vmatpush2.msra.mxu0 0.0
          %645 = vmatprep.subr.mxu0 0.0
          %646 = vmatpush2.msra.mxu0 0.0
          %647 = vmatprep.subr.mxu0 0.0
          %648 = vmatpush2.msra.mxu0 0.0
          %649 = vmatprep.subr.mxu0 0.0
          %650 = vmatpush2.msra.mxu0 0.0
          %651 = vmatprep.subr.mxu0 0.0
          %652 = vmatpush2.msra.mxu0 0.0
          %653 = vmatprep.subr.mxu0 0.0
          %654 = vmatpush2.msra.mxu0 0.0
          %655 = vmatprep.subr.mxu0 0.0
          %656 = vmatpush2.msra.mxu0 0.0
          %657 = vmatprep.subr.mxu0 0.0
          %658 = vmatpush2.msra.mxu0 0.0
          %659 = vmatprep.mubr.f32.mxu0 0.0
          %v660 = vand.u32 %v249, 4294901760
          %v661 = vsub.f32 %v249, %v660
          %v662 = vand.u32 %v661, 4294901760
          %663 = vmatmul.mubr.f32.gmra.mxu0 %v662
          %v664 = vpop.f32.mrf.mxu0
          %v665 = vadd.f32 %v563, %v664
          %v666 = vpop.f32.mrf.mxu0
          %v667 = vadd.f32 %v565, %v666
          %668 = vmatprep.mubr.f32.mxu0 0.0
          %v669 = vand.u32 %v252, 4294901760
          %v670 = vsub.f32 %v252, %v669
          %v671 = vand.u32 %v670, 4294901760
          %672 = vmatmul.mubr.f32.gmra.mxu0 %v671
          %v673 = vpop.f32.mrf.mxu0
          %v674 = vadd.f32 %v571, %v673
          %v675 = vpop.f32.mrf.mxu0
          %v676 = vadd.f32 %v573, %v675
          %677 = vmatprep.mubr.f32.mxu0 0.0
          %v678 = vand.u32 %v255, 4294901760
          %v679 = vsub.f32 %v255, %v678
          %v680 = vand.u32 %v679, 4294901760
          %681 = vmatmul.mubr.f32.gmra.mxu0 %v680
          %v682 = vpop.f32.mrf.mxu0
          %v683 = vadd.f32 %v579, %v682
          %v684 = vpop.f32.mrf.mxu0
          %v685 = vadd.f32 %v581, %v684
          %686 = vmatprep.mubr.f32.mxu0 0.0
          %v687 = vand.u32 %v258, 4294901760
          %v688 = vsub.f32 %v258, %v687
          %v689 = vand.u32 %v688, 4294901760
          %690 = vmatmul.mubr.f32.gmra.mxu0 %v689
          %v691 = vpop.f32.mrf.mxu0
          %v692 = vadd.f32 %v587, %v691
          %v693 = vpop.f32.mrf.mxu0
          %v694 = vadd.f32 %v589, %v693
          %695 = vdwg.mxu0
          %696 = vmatprep.subr.mxu0 0.0
          %697 = vmatpush1.msra.mxu0 0.0
          %698 = vmatprep.subr.mxu0 0.0
          %699 = vmatpush1.msra.mxu0 0.0
          %700 = vmatprep.subr.mxu0 0.0
          %701 = vmatpush1.msra.mxu0 0.0
          %702 = vmatprep.subr.mxu0 0.0
          %703 = vmatpush1.msra.mxu0 0.0
          %704 = vmatprep.subr.mxu0 0.0
          %705 = vmatpush1.msra.mxu0 0.0
          %706 = vmatprep.subr.mxu0 0.0
          %707 = vmatpush1.msra.mxu0 0.0
          %708 = vmatprep.subr.mxu0 0.0
          %709 = vmatpush1.msra.mxu0 0.0
          %710 = vmatprep.subr.mxu0 0.0
          %711 = vmatpush1.msra.mxu0 0.0
          %712 = vmatprep.subr.mxu0 0.0
          %713 = vmatpush1.msra.mxu0 0.0
          %714 = vmatprep.subr.mxu0 0.0
          %715 = vmatpush1.msra.mxu0 0.0
          %716 = vmatprep.subr.mxu0 0.0
          %717 = vmatpush1.msra.mxu0 0.0
          %718 = vmatprep.subr.mxu0 0.0
          %719 = vmatpush1.msra.mxu0 0.0
          %720 = vmatprep.subr.mxu0 0.0
          %721 = vmatpush1.msra.mxu0 0.0
          %722 = vmatprep.subr.mxu0 0.0
          %723 = vmatpush1.msra.mxu0 0.0
          %v724 = vand.u32 %v246, 4294901760
          %v725 = vsub.f32 %v246, %v724
          %v726 = vand.u32 %v725, 4294901760
          %727 = vmatprep.subr.mxu0 %v726
          %v728 = vand.u32 %v245, 4294901760
          %v729 = vsub.f32 %v245, %v728
          %v730 = vand.u32 %v729, 4294901760
          %731 = vmatpush1.msra.mxu0 %v730
          %v732 = vand.u32 %v244, 4294901760
          %v733 = vsub.f32 %v244, %v732
          %v734 = vand.u32 %v733, 4294901760
          %735 = vmatprep.subr.mxu0 %v734
          %v736 = vand.u32 %v243, 4294901760
          %v737 = vsub.f32 %v243, %v736
          %v738 = vand.u32 %v737, 4294901760
          %739 = vmatpush1.msra.mxu0 %v738
          %740 = vmatprep.subr.mxu0 0.0
          %741 = vmatpush2.msra.mxu0 0.0
          %742 = vmatprep.subr.mxu0 0.0
          %743 = vmatpush2.msra.mxu0 0.0
          %744 = vmatprep.subr.mxu0 0.0
          %745 = vmatpush2.msra.mxu0 0.0
          %746 = vmatprep.subr.mxu0 0.0
          %747 = vmatpush2.msra.mxu0 0.0
          %748 = vmatprep.subr.mxu0 0.0
          %749 = vmatpush2.msra.mxu0 0.0
          %750 = vmatprep.subr.mxu0 0.0
          %751 = vmatpush2.msra.mxu0 0.0
          %752 = vmatprep.subr.mxu0 0.0
          %753 = vmatpush2.msra.mxu0 0.0
          %754 = vmatprep.subr.mxu0 0.0
          %755 = vmatpush2.msra.mxu0 0.0
          %756 = vmatprep.subr.mxu0 0.0
          %757 = vmatpush2.msra.mxu0 0.0
          %758 = vmatprep.subr.mxu0 0.0
          %759 = vmatpush2.msra.mxu0 0.0
          %760 = vmatprep.subr.mxu0 0.0
          %761 = vmatpush2.msra.mxu0 0.0
          %762 = vmatprep.subr.mxu0 0.0
          %763 = vmatpush2.msra.mxu0 0.0
          %764 = vmatprep.subr.mxu0 0.0
          %765 = vmatpush2.msra.mxu0 0.0
          %766 = vmatprep.subr.mxu0 0.0
          %767 = vmatpush2.msra.mxu0 0.0
          %768 = vmatprep.subr.mxu0 0.0
          %769 = vmatpush2.msra.mxu0 0.0
          %770 = vmatprep.subr.mxu0 0.0
          %771 = vmatpush2.msra.mxu0 0.0
          %772 = vmatprep.mubr.f32.mxu0 0.0
          %v773 = vand.u32 %v249, 4294901760
          %774 = vmatmul.mubr.f32.gmra.mxu0 %v773
          %v775 = vpop.f32.mrf.mxu0
          %v776 = vadd.f32 %v665, %v775
          %v777 = vpop.f32.mrf.mxu0
          %v778 = vadd.f32 %v667, %v777
          %779 = vmatprep.mubr.f32.mxu0 0.0
          %v780 = vand.u32 %v252, 4294901760
          %781 = vmatmul.mubr.f32.gmra.mxu0 %v780
          %v782 = vpop.f32.mrf.mxu0
          %v783 = vadd.f32 %v674, %v782
          %v784 = vpop.f32.mrf.mxu0
          %v785 = vadd.f32 %v676, %v784
          %786 = vmatprep.mubr.f32.mxu0 0.0
          %v787 = vand.u32 %v255, 4294901760
          %788 = vmatmul.mubr.f32.gmra.mxu0 %v787
          %v789 = vpop.f32.mrf.mxu0
          %v790 = vadd.f32 %v683, %v789
          %v791 = vpop.f32.mrf.mxu0
          %v792 = vadd.f32 %v685, %v791
          %793 = vmatprep.mubr.f32.mxu0 0.0
          %v794 = vand.u32 %v258, 4294901760
          %795 = vmatmul.mubr.f32.gmra.mxu0 %v794
          %v796 = vpop.f32.mrf.mxu0
          %v797 = vadd.f32 %v692, %v796
          %v798 = vpop.f32.mrf.mxu0
          %v799 = vadd.f32 %v694, %v798
          %800 = vdwg.mxu0
          %801 = vmatprep.subr.mxu0 0.0
          %802 = vmatpush1.msra.mxu0 0.0
          %803 = vmatprep.subr.mxu0 0.0
          %804 = vmatpush1.msra.mxu0 0.0
          %805 = vmatprep.subr.mxu0 0.0
          %806 = vmatpush1.msra.mxu0 0.0
          %807 = vmatprep.subr.mxu0 0.0
          %808 = vmatpush1.msra.mxu0 0.0
          %809 = vmatprep.subr.mxu0 0.0
          %810 = vmatpush1.msra.mxu0 0.0
          %811 = vmatprep.subr.mxu0 0.0
          %812 = vmatpush1.msra.mxu0 0.0
          %813 = vmatprep.subr.mxu0 0.0
          %814 = vmatpush1.msra.mxu0 0.0
          %815 = vmatprep.subr.mxu0 0.0
          %816 = vmatpush1.msra.mxu0 0.0
          %817 = vmatprep.subr.mxu0 0.0
          %818 = vmatpush1.msra.mxu0 0.0
          %819 = vmatprep.subr.mxu0 0.0
          %820 = vmatpush1.msra.mxu0 0.0
          %821 = vmatprep.subr.mxu0 0.0
          %822 = vmatpush1.msra.mxu0 0.0
          %823 = vmatprep.subr.mxu0 0.0
          %824 = vmatpush1.msra.mxu0 0.0
          %825 = vmatprep.subr.mxu0 0.0
          %826 = vmatpush1.msra.mxu0 0.0
          %827 = vmatprep.subr.mxu0 0.0
          %828 = vmatpush1.msra.mxu0 0.0
          %v829 = vand.u32 %v246, 4294901760
          %830 = vmatprep.subr.mxu0 %v829
          %v831 = vand.u32 %v245, 4294901760
          %832 = vmatpush1.msra.mxu0 %v831
          %v833 = vand.u32 %v244, 4294901760
          %834 = vmatprep.subr.mxu0 %v833
          %v835 = vand.u32 %v243, 4294901760
          %836 = vmatpush1.msra.mxu0 %v835
          %837 = vmatprep.subr.mxu0 0.0
          %838 = vmatpush2.msra.mxu0 0.0
          %839 = vmatprep.subr.mxu0 0.0
          %840 = vmatpush2.msra.mxu0 0.0
          %841 = vmatprep.subr.mxu0 0.0
          %842 = vmatpush2.msra.mxu0 0.0
          %843 = vmatprep.subr.mxu0 0.0
          %844 = vmatpush2.msra.mxu0 0.0
          %845 = vmatprep.subr.mxu0 0.0
          %846 = vmatpush2.msra.mxu0 0.0
          %847 = vmatprep.subr.mxu0 0.0
          %848 = vmatpush2.msra.mxu0 0.0
          %849 = vmatprep.subr.mxu0 0.0
          %850 = vmatpush2.msra.mxu0 0.0
          %851 = vmatprep.subr.mxu0 0.0
          %852 = vmatpush2.msra.mxu0 0.0
          %853 = vmatprep.subr.mxu0 0.0
          %854 = vmatpush2.msra.mxu0 0.0
          %855 = vmatprep.subr.mxu0 0.0
          %856 = vmatpush2.msra.mxu0 0.0
          %857 = vmatprep.subr.mxu0 0.0
          %858 = vmatpush2.msra.mxu0 0.0
          %859 = vmatprep.subr.mxu0 0.0
          %860 = vmatpush2.msra.mxu0 0.0
          %861 = vmatprep.subr.mxu0 0.0
          %862 = vmatpush2.msra.mxu0 0.0
          %863 = vmatprep.subr.mxu0 0.0
          %864 = vmatpush2.msra.mxu0 0.0
          %865 = vmatprep.subr.mxu0 0.0
          %866 = vmatpush2.msra.mxu0 0.0
          %867 = vmatprep.subr.mxu0 0.0
          %868 = vmatpush2.msra.mxu0 0.0
          %869 = vmatprep.mubr.f32.mxu0 0.0
          %v870 = vand.u32 %v249, 4294901760
          %871 = vmatmul.mubr.f32.gmra.mxu0 %v870
          %v872 = vpop.f32.mrf.mxu0
          %v873 = vadd.f32 %v776, %v872
          %v874 = vpop.f32.mrf.mxu0
          %v875 = vadd.f32 %v778, %v874
          %876 = vmatprep.mubr.f32.mxu0 0.0
          %v877 = vand.u32 %v252, 4294901760
          %878 = vmatmul.mubr.f32.gmra.mxu0 %v877
          %v879 = vpop.f32.mrf.mxu0
          %v880 = vadd.f32 %v783, %v879
          %v881 = vpop.f32.mrf.mxu0
          %v882 = vadd.f32 %v785, %v881
          %883 = vmatprep.mubr.f32.mxu0 0.0
          %v884 = vand.u32 %v255, 4294901760
          %885 = vmatmul.mubr.f32.gmra.mxu0 %v884
          %v886 = vpop.f32.mrf.mxu0
          %v887 = vadd.f32 %v790, %v886
          %v888 = vpop.f32.mrf.mxu0
          %v889 = vadd.f32 %v792, %v888
          %890 = vmatprep.mubr.f32.mxu0 0.0
          %v891 = vand.u32 %v258, 4294901760
          %892 = vmatmul.mubr.f32.gmra.mxu0 %v891
          %v893 = vpop.f32.mrf.mxu0
          %v894 = vadd.f32 %v797, %v893
          %v895 = vpop.f32.mrf.mxu0
          %v896 = vadd.f32 %v799, %v895
          %897 = vdwg.mxu0
          %898 = vst [vmem:[%s221] sm:$0xff] %v873
          %899 = vst [vmem:[%s221 + $0x8] sm:$0xff] %v875
          %900 = vst [vmem:[%s221 + $0x10] sm:$0xff] %v880
          %901 = vst [vmem:[%s221 + $0x18] sm:$0xff] %v882
          %902 = vst [vmem:[%s221 + $0x20] sm:$0xff] %v887
          %903 = vst [vmem:[%s221 + $0x28] sm:$0xff] %v889
          %904 = vst [vmem:[%s221 + $0x30] sm:$0xff] %v894
          %905 = vst [vmem:[%s221 + $0x38] sm:$0xff] %v896
        $region40: #{tpu_custom_call.1} parent=35 // pred_fallthru
          _
        %p906 = scmp.eq.s32.totalorder %s22, 1
        // Predicated region
        $region41: #{tpu_custom_call.1} parent=35 // pred_check
          %p907 = pneg %p906
        $region42: #{tpu_custom_call.1} parent=35 // pred_check_branch
          %909 = sbr.rel (%p907) target = $region44
        $region43: #{tpu_custom_call.1} parent=35 // pred_region
          %v910 = vld [vmem:[%s232] sm:$0xff]
          %v911 = vld [vmem:[%s232 + $0x8] sm:$0xff]
          %v912 = vld [vmem:[%s232 + $0x10] sm:$0xff]
          %v913 = vld [vmem:[%s232 + $0x18] sm:$0xff]
          %v914 = vld [vmem:[%s3] sm:$0xff]
          %v915 = vld [vmem:[%s3 + $0x8] sm:$0xff]
          %v916 = vld [vmem:[%s3 + $0x10] sm:$0xff]
          %v917 = vld [vmem:[%s3 + $0x18] sm:$0xff]
          %vm918 = vcmask 130048
          %v920 = vsel %vm918, %v910, 0
          %v923 = vsel %vm918, %v911, 0
          %v926 = vsel %vm918, %v912, 0
          %v929 = vsel %vm918, %v913, 0
          %931 = vmatprep.subr.mxu0 0.0
          %932 = vmatpush1.msra.mxu0 0.0
          %933 = vmatprep.subr.mxu0 0.0
          %934 = vmatpush1.msra.mxu0 0.0
          %935 = vmatprep.subr.mxu0 0.0
          %936 = vmatpush1.msra.mxu0 0.0
          %937 = vmatprep.subr.mxu0 0.0
          %938 = vmatpush1.msra.mxu0 0.0
          %939 = vmatprep.subr.mxu0 0.0
          %940 = vmatpush1.msra.mxu0 0.0
          %941 = vmatprep.subr.mxu0 0.0
          %942 = vmatpush1.msra.mxu0 0.0
          %943 = vmatprep.subr.mxu0 0.0
          %944 = vmatpush1.msra.mxu0 0.0
          %945 = vmatprep.subr.mxu0 0.0
          %946 = vmatpush1.msra.mxu0 0.0
          %947 = vmatprep.subr.mxu0 0.0
          %948 = vmatpush1.msra.mxu0 0.0
          %949 = vmatprep.subr.mxu0 0.0
          %950 = vmatpush1.msra.mxu0 0.0
          %951 = vmatprep.subr.mxu0 0.0
          %952 = vmatpush1.msra.mxu0 0.0
          %953 = vmatprep.subr.mxu0 0.0
          %954 = vmatpush1.msra.mxu0 0.0
          %955 = vmatprep.subr.mxu0 0.0
          %956 = vmatpush1.msra.mxu0 0.0
          %957 = vmatprep.subr.mxu0 0.0
          %958 = vmatpush1.msra.mxu0 0.0
          %v959 = vand.u32 %v917, 4294901760
          %960 = vmatprep.subr.mxu0 %v959
          %v961 = vand.u32 %v916, 4294901760
          %962 = vmatpush1.msra.mxu0 %v961
          %v963 = vand.u32 %v915, 4294901760
          %964 = vmatprep.subr.mxu0 %v963
          %v965 = vand.u32 %v914, 4294901760
          %966 = vmatpush1.msra.mxu0 %v965
          %967 = vmatprep.subr.mxu0 0.0
          %968 = vmatpush2.msra.mxu0 0.0
          %969 = vmatprep.subr.mxu0 0.0
          %970 = vmatpush2.msra.mxu0 0.0
          %971 = vmatprep.subr.mxu0 0.0
          %972 = vmatpush2.msra.mxu0 0.0
          %973 = vmatprep.subr.mxu0 0.0
          %974 = vmatpush2.msra.mxu0 0.0
          %975 = vmatprep.subr.mxu0 0.0
          %976 = vmatpush2.msra.mxu0 0.0
          %977 = vmatprep.subr.mxu0 0.0
          %978 = vmatpush2.msra.mxu0 0.0
          %979 = vmatprep.subr.mxu0 0.0
          %980 = vmatpush2.msra.mxu0 0.0
          %981 = vmatprep.subr.mxu0 0.0
          %982 = vmatpush2.msra.mxu0 0.0
          %983 = vmatprep.subr.mxu0 0.0
          %984 = vmatpush2.msra.mxu0 0.0
          %985 = vmatprep.subr.mxu0 0.0
          %986 = vmatpush2.msra.mxu0 0.0
          %987 = vmatprep.subr.mxu0 0.0
          %988 = vmatpush2.msra.mxu0 0.0
          %989 = vmatprep.subr.mxu0 0.0
          %990 = vmatpush2.msra.mxu0 0.0
          %991 = vmatprep.subr.mxu0 0.0
          %992 = vmatpush2.msra.mxu0 0.0
          %993 = vmatprep.subr.mxu0 0.0
          %994 = vmatpush2.msra.mxu0 0.0
          %995 = vmatprep.subr.mxu0 0.0
          %996 = vmatpush2.msra.mxu0 0.0
          %997 = vmatprep.subr.mxu0 0.0
          %998 = vmatpush2.msra.mxu0 0.0
          %999 = vmatprep.mubr.f32.mxu0 0.0
          %v1000 = vand.u32 %v920, 4294901760
          %v1001 = vsub.f32 %v920, %v1000
          %v1002 = vand.u32 %v1001, 4294901760
          %v1003 = vsub.f32 %v1001, %v1002
          %v1004 = vand.u32 %v1003, 4294901760
          %1005 = vmatmul.mubr.f32.gmra.mxu0 %v1004
          %v1006 = vpop.f32.mrf.mxu0
          %v1007 = vadd.f32 0.0, %v1006
          %v1008 = vpop.f32.mrf.mxu0
          %v1009 = vadd.f32 0.0, %v1008
          %1010 = vmatprep.mubr.f32.mxu0 0.0
          %v1011 = vand.u32 %v923, 4294901760
          %v1012 = vsub.f32 %v923, %v1011
          %v1013 = vand.u32 %v1012, 4294901760
          %v1014 = vsub.f32 %v1012, %v1013
          %v1015 = vand.u32 %v1014, 4294901760
          %1016 = vmatmul.mubr.f32.gmra.mxu0 %v1015
          %v1017 = vpop.f32.mrf.mxu0
          %v1018 = vadd.f32 0.0, %v1017
          %v1019 = vpop.f32.mrf.mxu0
          %v1020 = vadd.f32 0.0, %v1019
          %1021 = vmatprep.mubr.f32.mxu0 0.0
          %v1022 = vand.u32 %v926, 4294901760
          %v1023 = vsub.f32 %v926, %v1022
          %v1024 = vand.u32 %v1023, 4294901760
          %v1025 = vsub.f32 %v1023, %v1024
          %v1026 = vand.u32 %v1025, 4294901760
          %1027 = vmatmul.mubr.f32.gmra.mxu0 %v1026
          %v1028 = vpop.f32.mrf.mxu0
          %v1029 = vadd.f32 0.0, %v1028
          %v1030 = vpop.f32.mrf.mxu0
          %v1031 = vadd.f32 0.0, %v1030
          %1032 = vmatprep.mubr.f32.mxu0 0.0
          %v1033 = vand.u32 %v929, 4294901760
          %v1034 = vsub.f32 %v929, %v1033
          %v1035 = vand.u32 %v1034, 4294901760
          %v1036 = vsub.f32 %v1034, %v1035
          %v1037 = vand.u32 %v1036, 4294901760
          %1038 = vmatmul.mubr.f32.gmra.mxu0 %v1037
          %v1039 = vpop.f32.mrf.mxu0
          %v1040 = vadd.f32 0.0, %v1039
          %v1041 = vpop.f32.mrf.mxu0
          %v1042 = vadd.f32 0.0, %v1041
          %1043 = vdwg.mxu0
          %1044 = vmatprep.subr.mxu0 0.0
          %1045 = vmatpush1.msra.mxu0 0.0
          %1046 = vmatprep.subr.mxu0 0.0
          %1047 = vmatpush1.msra.mxu0 0.0
          %1048 = vmatprep.subr.mxu0 0.0
          %1049 = vmatpush1.msra.mxu0 0.0
          %1050 = vmatprep.subr.mxu0 0.0
          %1051 = vmatpush1.msra.mxu0 0.0
          %1052 = vmatprep.subr.mxu0 0.0
          %1053 = vmatpush1.msra.mxu0 0.0
          %1054 = vmatprep.subr.mxu0 0.0
          %1055 = vmatpush1.msra.mxu0 0.0
          %1056 = vmatprep.subr.mxu0 0.0
          %1057 = vmatpush1.msra.mxu0 0.0
          %1058 = vmatprep.subr.mxu0 0.0
          %1059 = vmatpush1.msra.mxu0 0.0
          %1060 = vmatprep.subr.mxu0 0.0
          %1061 = vmatpush1.msra.mxu0 0.0
          %1062 = vmatprep.subr.mxu0 0.0
          %1063 = vmatpush1.msra.mxu0 0.0
          %1064 = vmatprep.subr.mxu0 0.0
          %1065 = vmatpush1.msra.mxu0 0.0
          %1066 = vmatprep.subr.mxu0 0.0
          %1067 = vmatpush1.msra.mxu0 0.0
          %1068 = vmatprep.subr.mxu0 0.0
          %1069 = vmatpush1.msra.mxu0 0.0
          %1070 = vmatprep.subr.mxu0 0.0
          %1071 = vmatpush1.msra.mxu0 0.0
          %v1072 = vand.u32 %v917, 4294901760
          %v1073 = vsub.f32 %v917, %v1072
          %v1074 = vand.u32 %v1073, 4294901760
          %v1075 = vsub.f32 %v1073, %v1074
          %v1076 = vand.u32 %v1075, 4294901760
          %1077 = vmatprep.subr.mxu0 %v1076
          %v1078 = vand.u32 %v916, 4294901760
          %v1079 = vsub.f32 %v916, %v1078
          %v1080 = vand.u32 %v1079, 4294901760
          %v1081 = vsub.f32 %v1079, %v1080
          %v1082 = vand.u32 %v1081, 4294901760
          %1083 = vmatpush1.msra.mxu0 %v1082
          %v1084 = vand.u32 %v915, 4294901760
          %v1085 = vsub.f32 %v915, %v1084
          %v1086 = vand.u32 %v1085, 4294901760
          %v1087 = vsub.f32 %v1085, %v1086
          %v1088 = vand.u32 %v1087, 4294901760
          %1089 = vmatprep.subr.mxu0 %v1088
          %v1090 = vand.u32 %v914, 4294901760
          %v1091 = vsub.f32 %v914, %v1090
          %v1092 = vand.u32 %v1091, 4294901760
          %v1093 = vsub.f32 %v1091, %v1092
          %v1094 = vand.u32 %v1093, 4294901760
          %1095 = vmatpush1.msra.mxu0 %v1094
          %1096 = vmatprep.subr.mxu0 0.0
          %1097 = vmatpush2.msra.mxu0 0.0
          %1098 = vmatprep.subr.mxu0 0.0
          %1099 = vmatpush2.msra.mxu0 0.0
          %1100 = vmatprep.subr.mxu0 0.0
          %1101 = vmatpush2.msra.mxu0 0.0
          %1102 = vmatprep.subr.mxu0 0.0
          %1103 = vmatpush2.msra.mxu0 0.0
          %1104 = vmatprep.subr.mxu0 0.0
          %1105 = vmatpush2.msra.mxu0 0.0
          %1106 = vmatprep.subr.mxu0 0.0
          %1107 = vmatpush2.msra.mxu0 0.0
          %1108 = vmatprep.subr.mxu0 0.0
          %1109 = vmatpush2.msra.mxu0 0.0
          %1110 = vmatprep.subr.mxu0 0.0
          %1111 = vmatpush2.msra.mxu0 0.0
          %1112 = vmatprep.subr.mxu0 0.0
          %1113 = vmatpush2.msra.mxu0 0.0
          %1114 = vmatprep.subr.mxu0 0.0
          %1115 = vmatpush2.msra.mxu0 0.0
          %1116 = vmatprep.subr.mxu0 0.0
          %1117 = vmatpush2.msra.mxu0 0.0
          %1118 = vmatprep.subr.mxu0 0.0
          %1119 = vmatpush2.msra.mxu0 0.0
          %1120 = vmatprep.subr.mxu0 0.0
          %1121 = vmatpush2.msra.mxu0 0.0
          %1122 = vmatprep.subr.mxu0 0.0
          %1123 = vmatpush2.msra.mxu0 0.0
          %1124 = vmatprep.subr.mxu0 0.0
          %1125 = vmatpush2.msra.mxu0 0.0
          %1126 = vmatprep.subr.mxu0 0.0
          %1127 = vmatpush2.msra.mxu0 0.0
          %1128 = vmatprep.mubr.f32.mxu0 0.0
          %v1129 = vand.u32 %v920, 4294901760
          %1130 = vmatmul.mubr.f32.gmra.mxu0 %v1129
          %v1131 = vpop.f32.mrf.mxu0
          %v1132 = vadd.f32 %v1007, %v1131
          %v1133 = vpop.f32.mrf.mxu0
          %v1134 = vadd.f32 %v1009, %v1133
          %1135 = vmatprep.mubr.f32.mxu0 0.0
          %v1136 = vand.u32 %v923, 4294901760
          %1137 = vmatmul.mubr.f32.gmra.mxu0 %v1136
          %v1138 = vpop.f32.mrf.mxu0
          %v1139 = vadd.f32 %v1018, %v1138
          %v1140 = vpop.f32.mrf.mxu0
          %v1141 = vadd.f32 %v1020, %v1140
          %1142 = vmatprep.mubr.f32.mxu0 0.0
          %v1143 = vand.u32 %v926, 4294901760
          %1144 = vmatmul.mubr.f32.gmra.mxu0 %v1143
          %v1145 = vpop.f32.mrf.mxu0
          %v1146 = vadd.f32 %v1029, %v1145
          %v1147 = vpop.f32.mrf.mxu0
          %v1148 = vadd.f32 %v1031, %v1147
          %1149 = vmatprep.mubr.f32.mxu0 0.0
          %v1150 = vand.u32 %v929, 4294901760
          %1151 = vmatmul.mubr.f32.gmra.mxu0 %v1150
          %v1152 = vpop.f32.mrf.mxu0
          %v1153 = vadd.f32 %v1040, %v1152
          %v1154 = vpop.f32.mrf.mxu0
          %v1155 = vadd.f32 %v1042, %v1154
          %1156 = vdwg.mxu0
          %1157 = vmatprep.subr.mxu0 0.0
          %1158 = vmatpush1.msra.mxu0 0.0
          %1159 = vmatprep.subr.mxu0 0.0
          %1160 = vmatpush1.msra.mxu0 0.0
          %1161 = vmatprep.subr.mxu0 0.0
          %1162 = vmatpush1.msra.mxu0 0.0
          %1163 = vmatprep.subr.mxu0 0.0
          %1164 = vmatpush1.msra.mxu0 0.0
          %1165 = vmatprep.subr.mxu0 0.0
          %1166 = vmatpush1.msra.mxu0 0.0
          %1167 = vmatprep.subr.mxu0 0.0
          %1168 = vmatpush1.msra.mxu0 0.0
          %1169 = vmatprep.subr.mxu0 0.0
          %1170 = vmatpush1.msra.mxu0 0.0
          %1171 = vmatprep.subr.mxu0 0.0
          %1172 = vmatpush1.msra.mxu0 0.0
          %1173 = vmatprep.subr.mxu0 0.0
          %1174 = vmatpush1.msra.mxu0 0.0
          %1175 = vmatprep.subr.mxu0 0.0
          %1176 = vmatpush1.msra.mxu0 0.0
          %1177 = vmatprep.subr.mxu0 0.0
          %1178 = vmatpush1.msra.mxu0 0.0
          %1179 = vmatprep.subr.mxu0 0.0
          %1180 = vmatpush1.msra.mxu0 0.0
          %1181 = vmatprep.subr.mxu0 0.0
          %1182 = vmatpush1.msra.mxu0 0.0
          %1183 = vmatprep.subr.mxu0 0.0
          %1184 = vmatpush1.msra.mxu0 0.0
          %v1185 = vand.u32 %v917, 4294901760
          %v1186 = vsub.f32 %v917, %v1185
          %1187 = vmatprep.subr.mxu0 %v1186
          %v1188 = vand.u32 %v916, 4294901760
          %v1189 = vsub.f32 %v916, %v1188
          %1190 = vmatpush1.msra.mxu0 %v1189
          %v1191 = vand.u32 %v915, 4294901760
          %v1192 = vsub.f32 %v915, %v1191
          %1193 = vmatprep.subr.mxu0 %v1192
          %v1194 = vand.u32 %v914, 4294901760
          %v1195 = vsub.f32 %v914, %v1194
          %1196 = vmatpush1.msra.mxu0 %v1195
          %1197 = vmatprep.subr.mxu0 0.0
          %1198 = vmatpush2.msra.mxu0 0.0
          %1199 = vmatprep.subr.mxu0 0.0
          %1200 = vmatpush2.msra.mxu0 0.0
          %1201 = vmatprep.subr.mxu0 0.0
          %1202 = vmatpush2.msra.mxu0 0.0
          %1203 = vmatprep.subr.mxu0 0.0
          %1204 = vmatpush2.msra.mxu0 0.0
          %1205 = vmatprep.subr.mxu0 0.0
          %1206 = vmatpush2.msra.mxu0 0.0
          %1207 = vmatprep.subr.mxu0 0.0
          %1208 = vmatpush2.msra.mxu0 0.0
          %1209 = vmatprep.subr.mxu0 0.0
          %1210 = vmatpush2.msra.mxu0 0.0
          %1211 = vmatprep.subr.mxu0 0.0
          %1212 = vmatpush2.msra.mxu0 0.0
          %1213 = vmatprep.subr.mxu0 0.0
          %1214 = vmatpush2.msra.mxu0 0.0
          %1215 = vmatprep.subr.mxu0 0.0
          %1216 = vmatpush2.msra.mxu0 0.0
          %1217 = vmatprep.subr.mxu0 0.0
          %1218 = vmatpush2.msra.mxu0 0.0
          %1219 = vmatprep.subr.mxu0 0.0
          %1220 = vmatpush2.msra.mxu0 0.0
          %1221 = vmatprep.subr.mxu0 0.0
          %1222 = vmatpush2.msra.mxu0 0.0
          %1223 = vmatprep.subr.mxu0 0.0
          %1224 = vmatpush2.msra.mxu0 0.0
          %1225 = vmatprep.subr.mxu0 0.0
          %1226 = vmatpush2.msra.mxu0 0.0
          %1227 = vmatprep.subr.mxu0 0.0
          %1228 = vmatpush2.msra.mxu0 0.0
          %1229 = vmatprep.mubr.f32.mxu0 0.0
          %v1230 = vand.u32 %v920, 4294901760
          %v1231 = vsub.f32 %v920, %v1230
          %1232 = vmatmul.mubr.f32.gmra.mxu0 %v1231
          %v1233 = vpop.f32.mrf.mxu0
          %v1234 = vadd.f32 %v1132, %v1233
          %v1235 = vpop.f32.mrf.mxu0
          %v1236 = vadd.f32 %v1134, %v1235
          %1237 = vmatprep.mubr.f32.mxu0 0.0
          %v1238 = vand.u32 %v923, 4294901760
          %v1239 = vsub.f32 %v923, %v1238
          %1240 = vmatmul.mubr.f32.gmra.mxu0 %v1239
          %v1241 = vpop.f32.mrf.mxu0
          %v1242 = vadd.f32 %v1139, %v1241
          %v1243 = vpop.f32.mrf.mxu0
          %v1244 = vadd.f32 %v1141, %v1243
          %1245 = vmatprep.mubr.f32.mxu0 0.0
          %v1246 = vand.u32 %v926, 4294901760
          %v1247 = vsub.f32 %v926, %v1246
          %1248 = vmatmul.mubr.f32.gmra.mxu0 %v1247
          %v1249 = vpop.f32.mrf.mxu0
          %v1250 = vadd.f32 %v1146, %v1249
          %v1251 = vpop.f32.mrf.mxu0
          %v1252 = vadd.f32 %v1148, %v1251
          %1253 = vmatprep.mubr.f32.mxu0 0.0
          %v1254 = vand.u32 %v929, 4294901760
          %v1255 = vsub.f32 %v929, %v1254
          %1256 = vmatmul.mubr.f32.gmra.mxu0 %v1255
          %v1257 = vpop.f32.mrf.mxu0
          %v1258 = vadd.f32 %v1153, %v1257
          %v1259 = vpop.f32.mrf.mxu0
          %v1260 = vadd.f32 %v1155, %v1259
          %1261 = vdwg.mxu0
          %1262 = vmatprep.subr.mxu0 0.0
          %1263 = vmatpush1.msra.mxu0 0.0
          %1264 = vmatprep.subr.mxu0 0.0
          %1265 = vmatpush1.msra.mxu0 0.0
          %1266 = vmatprep.subr.mxu0 0.0
          %1267 = vmatpush1.msra.mxu0 0.0
          %1268 = vmatprep.subr.mxu0 0.0
          %1269 = vmatpush1.msra.mxu0 0.0
          %1270 = vmatprep.subr.mxu0 0.0
          %1271 = vmatpush1.msra.mxu0 0.0
          %1272 = vmatprep.subr.mxu0 0.0
          %1273 = vmatpush1.msra.mxu0 0.0
          %1274 = vmatprep.subr.mxu0 0.0
          %1275 = vmatpush1.msra.mxu0 0.0
          %1276 = vmatprep.subr.mxu0 0.0
          %1277 = vmatpush1.msra.mxu0 0.0
          %1278 = vmatprep.subr.mxu0 0.0
          %1279 = vmatpush1.msra.mxu0 0.0
          %1280 = vmatprep.subr.mxu0 0.0
          %1281 = vmatpush1.msra.mxu0 0.0
          %1282 = vmatprep.subr.mxu0 0.0
          %1283 = vmatpush1.msra.mxu0 0.0
          %1284 = vmatprep.subr.mxu0 0.0
          %1285 = vmatpush1.msra.mxu0 0.0
          %1286 = vmatprep.subr.mxu0 0.0
          %1287 = vmatpush1.msra.mxu0 0.0
          %1288 = vmatprep.subr.mxu0 0.0
          %1289 = vmatpush1.msra.mxu0 0.0
          %v1290 = vand.u32 %v917, 4294901760
          %1291 = vmatprep.subr.mxu0 %v1290
          %v1292 = vand.u32 %v916, 4294901760
          %1293 = vmatpush1.msra.mxu0 %v1292
          %v1294 = vand.u32 %v915, 4294901760
          %1295 = vmatprep.subr.mxu0 %v1294
          %v1296 = vand.u32 %v914, 4294901760
          %1297 = vmatpush1.msra.mxu0 %v1296
          %1298 = vmatprep.subr.mxu0 0.0
          %1299 = vmatpush2.msra.mxu0 0.0
          %1300 = vmatprep.subr.mxu0 0.0
          %1301 = vmatpush2.msra.mxu0 0.0
          %1302 = vmatprep.subr.mxu0 0.0
          %1303 = vmatpush2.msra.mxu0 0.0
          %1304 = vmatprep.subr.mxu0 0.0
          %1305 = vmatpush2.msra.mxu0 0.0
          %1306 = vmatprep.subr.mxu0 0.0
          %1307 = vmatpush2.msra.mxu0 0.0
          %1308 = vmatprep.subr.mxu0 0.0
          %1309 = vmatpush2.msra.mxu0 0.0
          %1310 = vmatprep.subr.mxu0 0.0
          %1311 = vmatpush2.msra.mxu0 0.0
          %1312 = vmatprep.subr.mxu0 0.0
          %1313 = vmatpush2.msra.mxu0 0.0
          %1314 = vmatprep.subr.mxu0 0.0
          %1315 = vmatpush2.msra.mxu0 0.0
          %1316 = vmatprep.subr.mxu0 0.0
          %1317 = vmatpush2.msra.mxu0 0.0
          %1318 = vmatprep.subr.mxu0 0.0
          %1319 = vmatpush2.msra.mxu0 0.0
          %1320 = vmatprep.subr.mxu0 0.0
          %1321 = vmatpush2.msra.mxu0 0.0
          %1322 = vmatprep.subr.mxu0 0.0
          %1323 = vmatpush2.msra.mxu0 0.0
          %1324 = vmatprep.subr.mxu0 0.0
          %1325 = vmatpush2.msra.mxu0 0.0
          %1326 = vmatprep.subr.mxu0 0.0
          %1327 = vmatpush2.msra.mxu0 0.0
          %1328 = vmatprep.subr.mxu0 0.0
          %1329 = vmatpush2.msra.mxu0 0.0
          %1330 = vmatprep.mubr.f32.mxu0 0.0
          %v1331 = vand.u32 %v920, 4294901760
          %v1332 = vsub.f32 %v920, %v1331
          %v1333 = vand.u32 %v1332, 4294901760
          %1334 = vmatmul.mubr.f32.gmra.mxu0 %v1333
          %v1335 = vpop.f32.mrf.mxu0
          %v1336 = vadd.f32 %v1234, %v1335
          %v1337 = vpop.f32.mrf.mxu0
          %v1338 = vadd.f32 %v1236, %v1337
          %1339 = vmatprep.mubr.f32.mxu0 0.0
          %v1340 = vand.u32 %v923, 4294901760
          %v1341 = vsub.f32 %v923, %v1340
          %v1342 = vand.u32 %v1341, 4294901760
          %1343 = vmatmul.mubr.f32.gmra.mxu0 %v1342
          %v1344 = vpop.f32.mrf.mxu0
          %v1345 = vadd.f32 %v1242, %v1344
          %v1346 = vpop.f32.mrf.mxu0
          %v1347 = vadd.f32 %v1244, %v1346
          %1348 = vmatprep.mubr.f32.mxu0 0.0
          %v1349 = vand.u32 %v926, 4294901760
          %v1350 = vsub.f32 %v926, %v1349
          %v1351 = vand.u32 %v1350, 4294901760
          %1352 = vmatmul.mubr.f32.gmra.mxu0 %v1351
          %v1353 = vpop.f32.mrf.mxu0
          %v1354 = vadd.f32 %v1250, %v1353
          %v1355 = vpop.f32.mrf.mxu0
          %v1356 = vadd.f32 %v1252, %v1355
          %1357 = vmatprep.mubr.f32.mxu0 0.0
          %v1358 = vand.u32 %v929, 4294901760
          %v1359 = vsub.f32 %v929, %v1358
          %v1360 = vand.u32 %v1359, 4294901760
          %1361 = vmatmul.mubr.f32.gmra.mxu0 %v1360
          %v1362 = vpop.f32.mrf.mxu0
          %v1363 = vadd.f32 %v1258, %v1362
          %v1364 = vpop.f32.mrf.mxu0
          %v1365 = vadd.f32 %v1260, %v1364
          %1366 = vdwg.mxu0
          %1367 = vmatprep.subr.mxu0 0.0
          %1368 = vmatpush1.msra.mxu0 0.0
          %1369 = vmatprep.subr.mxu0 0.0
          %1370 = vmatpush1.msra.mxu0 0.0
          %1371 = vmatprep.subr.mxu0 0.0
          %1372 = vmatpush1.msra.mxu0 0.0
          %1373 = vmatprep.subr.mxu0 0.0
          %1374 = vmatpush1.msra.mxu0 0.0
          %1375 = vmatprep.subr.mxu0 0.0
          %1376 = vmatpush1.msra.mxu0 0.0
          %1377 = vmatprep.subr.mxu0 0.0
          %1378 = vmatpush1.msra.mxu0 0.0
          %1379 = vmatprep.subr.mxu0 0.0
          %1380 = vmatpush1.msra.mxu0 0.0
          %1381 = vmatprep.subr.mxu0 0.0
          %1382 = vmatpush1.msra.mxu0 0.0
          %1383 = vmatprep.subr.mxu0 0.0
          %1384 = vmatpush1.msra.mxu0 0.0
          %1385 = vmatprep.subr.mxu0 0.0
          %1386 = vmatpush1.msra.mxu0 0.0
          %1387 = vmatprep.subr.mxu0 0.0
          %1388 = vmatpush1.msra.mxu0 0.0
          %1389 = vmatprep.subr.mxu0 0.0
          %1390 = vmatpush1.msra.mxu0 0.0
          %1391 = vmatprep.subr.mxu0 0.0
          %1392 = vmatpush1.msra.mxu0 0.0
          %1393 = vmatprep.subr.mxu0 0.0
          %1394 = vmatpush1.msra.mxu0 0.0
          %v1395 = vand.u32 %v917, 4294901760
          %v1396 = vsub.f32 %v917, %v1395
          %v1397 = vand.u32 %v1396, 4294901760
          %1398 = vmatprep.subr.mxu0 %v1397
          %v1399 = vand.u32 %v916, 4294901760
          %v1400 = vsub.f32 %v916, %v1399
          %v1401 = vand.u32 %v1400, 4294901760
          %1402 = vmatpush1.msra.mxu0 %v1401
          %v1403 = vand.u32 %v915, 4294901760
          %v1404 = vsub.f32 %v915, %v1403
          %v1405 = vand.u32 %v1404, 4294901760
          %1406 = vmatprep.subr.mxu0 %v1405
          %v1407 = vand.u32 %v914, 4294901760
          %v1408 = vsub.f32 %v914, %v1407
          %v1409 = vand.u32 %v1408, 4294901760
          %1410 = vmatpush1.msra.mxu0 %v1409
          %1411 = vmatprep.subr.mxu0 0.0
          %1412 = vmatpush2.msra.mxu0 0.0
          %1413 = vmatprep.subr.mxu0 0.0
          %1414 = vmatpush2.msra.mxu0 0.0
          %1415 = vmatprep.subr.mxu0 0.0
          %1416 = vmatpush2.msra.mxu0 0.0
          %1417 = vmatprep.subr.mxu0 0.0
          %1418 = vmatpush2.msra.mxu0 0.0
          %1419 = vmatprep.subr.mxu0 0.0
          %1420 = vmatpush2.msra.mxu0 0.0
          %1421 = vmatprep.subr.mxu0 0.0
          %1422 = vmatpush2.msra.mxu0 0.0
          %1423 = vmatprep.subr.mxu0 0.0
          %1424 = vmatpush2.msra.mxu0 0.0
          %1425 = vmatprep.subr.mxu0 0.0
          %1426 = vmatpush2.msra.mxu0 0.0
          %1427 = vmatprep.subr.mxu0 0.0
          %1428 = vmatpush2.msra.mxu0 0.0
          %1429 = vmatprep.subr.mxu0 0.0
          %1430 = vmatpush2.msra.mxu0 0.0
          %1431 = vmatprep.subr.mxu0 0.0
          %1432 = vmatpush2.msra.mxu0 0.0
          %1433 = vmatprep.subr.mxu0 0.0
          %1434 = vmatpush2.msra.mxu0 0.0
          %1435 = vmatprep.subr.mxu0 0.0
          %1436 = vmatpush2.msra.mxu0 0.0
          %1437 = vmatprep.subr.mxu0 0.0
          %1438 = vmatpush2.msra.mxu0 0.0
          %1439 = vmatprep.subr.mxu0 0.0
          %1440 = vmatpush2.msra.mxu0 0.0
          %1441 = vmatprep.subr.mxu0 0.0
          %1442 = vmatpush2.msra.mxu0 0.0
          %1443 = vmatprep.mubr.f32.mxu0 0.0
          %v1444 = vand.u32 %v920, 4294901760
          %1445 = vmatmul.mubr.f32.gmra.mxu0 %v1444
          %v1446 = vpop.f32.mrf.mxu0
          %v1447 = vadd.f32 %v1336, %v1446
          %v1448 = vpop.f32.mrf.mxu0
          %v1449 = vadd.f32 %v1338, %v1448
          %1450 = vmatprep.mubr.f32.mxu0 0.0
          %v1451 = vand.u32 %v923, 4294901760
          %1452 = vmatmul.mubr.f32.gmra.mxu0 %v1451
          %v1453 = vpop.f32.mrf.mxu0
          %v1454 = vadd.f32 %v1345, %v1453
          %v1455 = vpop.f32.mrf.mxu0
          %v1456 = vadd.f32 %v1347, %v1455
          %1457 = vmatprep.mubr.f32.mxu0 0.0
          %v1458 = vand.u32 %v926, 4294901760
          %1459 = vmatmul.mubr.f32.gmra.mxu0 %v1458
          %v1460 = vpop.f32.mrf.mxu0
          %v1461 = vadd.f32 %v1354, %v1460
          %v1462 = vpop.f32.mrf.mxu0
          %v1463 = vadd.f32 %v1356, %v1462
          %1464 = vmatprep.mubr.f32.mxu0 0.0
          %v1465 = vand.u32 %v929, 4294901760
          %1466 = vmatmul.mubr.f32.gmra.mxu0 %v1465
          %v1467 = vpop.f32.mrf.mxu0
          %v1468 = vadd.f32 %v1363, %v1467
          %v1469 = vpop.f32.mrf.mxu0
          %v1470 = vadd.f32 %v1365, %v1469
          %1471 = vdwg.mxu0
          %1472 = vmatprep.subr.mxu0 0.0
          %1473 = vmatpush1.msra.mxu0 0.0
          %1474 = vmatprep.subr.mxu0 0.0
          %1475 = vmatpush1.msra.mxu0 0.0
          %1476 = vmatprep.subr.mxu0 0.0
          %1477 = vmatpush1.msra.mxu0 0.0
          %1478 = vmatprep.subr.mxu0 0.0
          %1479 = vmatpush1.msra.mxu0 0.0
          %1480 = vmatprep.subr.mxu0 0.0
          %1481 = vmatpush1.msra.mxu0 0.0
          %1482 = vmatprep.subr.mxu0 0.0
          %1483 = vmatpush1.msra.mxu0 0.0
          %1484 = vmatprep.subr.mxu0 0.0
          %1485 = vmatpush1.msra.mxu0 0.0
          %1486 = vmatprep.subr.mxu0 0.0
          %1487 = vmatpush1.msra.mxu0 0.0
          %1488 = vmatprep.subr.mxu0 0.0
          %1489 = vmatpush1.msra.mxu0 0.0
          %1490 = vmatprep.subr.mxu0 0.0
          %1491 = vmatpush1.msra.mxu0 0.0
          %1492 = vmatprep.subr.mxu0 0.0
          %1493 = vmatpush1.msra.mxu0 0.0
          %1494 = vmatprep.subr.mxu0 0.0
          %1495 = vmatpush1.msra.mxu0 0.0
          %1496 = vmatprep.subr.mxu0 0.0
          %1497 = vmatpush1.msra.mxu0 0.0
          %1498 = vmatprep.subr.mxu0 0.0
          %1499 = vmatpush1.msra.mxu0 0.0
          %v1500 = vand.u32 %v917, 4294901760
          %1501 = vmatprep.subr.mxu0 %v1500
          %v1502 = vand.u32 %v916, 4294901760
          %1503 = vmatpush1.msra.mxu0 %v1502
          %v1504 = vand.u32 %v915, 4294901760
          %1505 = vmatprep.subr.mxu0 %v1504
          %v1506 = vand.u32 %v914, 4294901760
          %1507 = vmatpush1.msra.mxu0 %v1506
          %1508 = vmatprep.subr.mxu0 0.0
          %1509 = vmatpush2.msra.mxu0 0.0
          %1510 = vmatprep.subr.mxu0 0.0
          %1511 = vmatpush2.msra.mxu0 0.0
          %1512 = vmatprep.subr.mxu0 0.0
          %1513 = vmatpush2.msra.mxu0 0.0
          %1514 = vmatprep.subr.mxu0 0.0
          %1515 = vmatpush2.msra.mxu0 0.0
          %1516 = vmatprep.subr.mxu0 0.0
          %1517 = vmatpush2.msra.mxu0 0.0
          %1518 = vmatprep.subr.mxu0 0.0
          %1519 = vmatpush2.msra.mxu0 0.0
          %1520 = vmatprep.subr.mxu0 0.0
          %1521 = vmatpush2.msra.mxu0 0.0
          %1522 = vmatprep.subr.mxu0 0.0
          %1523 = vmatpush2.msra.mxu0 0.0
          %1524 = vmatprep.subr.mxu0 0.0
          %1525 = vmatpush2.msra.mxu0 0.0
          %1526 = vmatprep.subr.mxu0 0.0
          %1527 = vmatpush2.msra.mxu0 0.0
          %1528 = vmatprep.subr.mxu0 0.0
          %1529 = vmatpush2.msra.mxu0 0.0
          %1530 = vmatprep.subr.mxu0 0.0
          %1531 = vmatpush2.msra.mxu0 0.0
          %1532 = vmatprep.subr.mxu0 0.0
          %1533 = vmatpush2.msra.mxu0 0.0
          %1534 = vmatprep.subr.mxu0 0.0
          %1535 = vmatpush2.msra.mxu0 0.0
          %1536 = vmatprep.subr.mxu0 0.0
          %1537 = vmatpush2.msra.mxu0 0.0
          %1538 = vmatprep.subr.mxu0 0.0
          %1539 = vmatpush2.msra.mxu0 0.0
          %1540 = vmatprep.mubr.f32.mxu0 0.0
          %v1541 = vand.u32 %v920, 4294901760
          %1542 = vmatmul.mubr.f32.gmra.mxu0 %v1541
          %v1543 = vpop.f32.mrf.mxu0
          %v1544 = vadd.f32 %v1447, %v1543
          %v1545 = vpop.f32.mrf.mxu0
          %v1546 = vadd.f32 %v1449, %v1545
          %1547 = vmatprep.mubr.f32.mxu0 0.0
          %v1548 = vand.u32 %v923, 4294901760
          %1549 = vmatmul.mubr.f32.gmra.mxu0 %v1548
          %v1550 = vpop.f32.mrf.mxu0
          %v1551 = vadd.f32 %v1454, %v1550
          %v1552 = vpop.f32.mrf.mxu0
          %v1553 = vadd.f32 %v1456, %v1552
          %1554 = vmatprep.mubr.f32.mxu0 0.0
          %v1555 = vand.u32 %v926, 4294901760
          %1556 = vmatmul.mubr.f32.gmra.mxu0 %v1555
          %v1557 = vpop.f32.mrf.mxu0
          %v1558 = vadd.f32 %v1461, %v1557
          %v1559 = vpop.f32.mrf.mxu0
          %v1560 = vadd.f32 %v1463, %v1559
          %1561 = vmatprep.mubr.f32.mxu0 0.0
          %v1562 = vand.u32 %v929, 4294901760
          %1563 = vmatmul.mubr.f32.gmra.mxu0 %v1562
          %v1564 = vpop.f32.mrf.mxu0
          %v1565 = vadd.f32 %v1468, %v1564
          %v1566 = vpop.f32.mrf.mxu0
          %v1567 = vadd.f32 %v1470, %v1566
          %1568 = vdwg.mxu0
          %1569 = vst [vmem:[%s221] sm:$0xff] %v1544
          %1570 = vst [vmem:[%s221 + $0x8] sm:$0xff] %v1546
          %1571 = vst [vmem:[%s221 + $0x10] sm:$0xff] %v1551
          %1572 = vst [vmem:[%s221 + $0x18] sm:$0xff] %v1553
          %1573 = vst [vmem:[%s221 + $0x20] sm:$0xff] %v1558
          %1574 = vst [vmem:[%s221 + $0x28] sm:$0xff] %v1560
          %1575 = vst [vmem:[%s221 + $0x30] sm:$0xff] %v1565
          %1576 = vst [vmem:[%s221 + $0x38] sm:$0xff] %v1567
        $region44: #{tpu_custom_call.1} parent=35 // pred_fallthru
          _
        %s1577 = sand.u32 %s134, 1
        %s1578 = scalar_lea.sflag [#allocation3], %s1577
        %s1579 = sand.u32 %s134, 1
        %s1580 = smul.addr %s1579, 64
        %s1581 = scalar_lea.vmem [#allocation2], %s1580
        // Predicated region
        $region45: #{tpu_custom_call.1} parent=35 // pred_check
          %p1582 = pneg %p144
        $region46: #{tpu_custom_call.1} parent=35 // pred_check_branch
          %1584 = sbr.rel (%p1582) target = $region48
        $region47: #{tpu_custom_call.1} parent=35 // pred_region
          %s1585 = smul.u32 4, %s23
          %s1587 = ssub.s32 1024, 1024
          %1588 = vsyncadd %s1578, %s1587
          %s1589 = smul.addr %s1585, 2
          %s1590 = smul.addr %s22, 8
          %s1591 = sadd.s32 %s1589, %s1590
          %s1592 = smul.addr %s1591, 128
          %s1593 = scalar_lea.hbm %s4, %s1592
          %s1594 = sshll.u32 %s1581, 4
          %s1595 = int_to_ptr.vmem [resolvable:$true] %s1594
          %1600 = dma.vmem_to_hbm [thread:$0]  %s1595, 1024, %s1593, %s1578, 256, 256, 16
        $region48: #{tpu_custom_call.1} parent=35 // pred_fallthru
          _
      $region36: #{tpu_custom_call.1} parent=5 // pred_fallthru
        _
      %p1601 = scmp.le.s32.totalorder 2, %s13
      // Predicated region
      $region49: #{tpu_custom_call.1} parent=5 // pred_check
        %p1602 = pneg %p1601
      $region50: #{tpu_custom_call.1} parent=5 // pred_check_branch
        %1604 = sbr.rel (%p1602) target = $region52
      $region51: #{tpu_custom_call.1} parent=5 // pred_region
        %s1605 = ssub.s32 %s13, 2
        // Predicated region
        $region53: #{tpu_custom_call.1} parent=51 // pred_check
          %p1606 = pneg %p150
        $region54: #{tpu_custom_call.1} parent=51 // pred_check_branch
          %1608 = sbr.rel (%p1606) target = $region56
        $region55: #{tpu_custom_call.1} parent=51 // pred_region
          %s1609 = sand.u32 %s135, 1
          %s1610 = scalar_lea.sflag [#allocation3], %s1609
          %s1611 = sand.u32 %s135, 1
          %s1612 = smul.addr %s1611, 64
          %s1613 = scalar_lea.vmem [#allocation2], %s1612
          %1614 = dma.done %s1610, 1024
        $region56: #{tpu_custom_call.1} parent=51 // pred_fallthru
          _
      $region52: #{tpu_custom_call.1} parent=5 // pred_fallthru
        _
    $region6: #{tpu_custom_call.1} parent=1 // loop_footer
      %s17 = sadd.s32 1, %s13
    $region7: #{tpu_custom_call.1} parent=1 // loop_footer_branch
      %12 = sbr.rel target = $region3
    $region8: #{tpu_custom_call.1} parent=1 // loop_exit
      _
    %1615 = vsyncpa [#allocation3], 1
    %s1616 = scalar_lea.sflag [#allocation3], 1
    %1617 = vsyncpa %s1616, 1

</llo_original>
